<compile_context>
chip_gen: v6e
topology: v6e:2x2x1
jax: 0.10.0
libtpu: 0.0.40
codegen_flags: <defaults>
</compile_context>

<pallas_src>
import functools

import jax
import jax.numpy as jnp
from jax import lax
from jax.experimental import pallas as pl
from jax.experimental.pallas import tpu as pltpu


def _round_up(x, m):
    return ((x + m - 1) // m) * m


# ---------------------------------------------------------------------------
# Pallas kernel: one batch element per grid step.  Fused Q/KV projections,
# per-head softmax attention, single out-projection matmul, residual add.
# ---------------------------------------------------------------------------
def _hier_agg_kernel(hd, H, Lk, Lkp, scale, compute_dtype,
                     xq_ref, xk_ref,
                     wq_ref, bq_ref, wkv_ref, bkv_ref, wo_ref, bo_ref,
                     o_ref, q_scr, kv_scr, ctx_scr):
    Lqp = q_scr.shape[0]
    Dp = q_scr.shape[-1]

    # Fused projections (bf16 MXU operands, f32 accumulation).  Cast to the
    # compute dtype right after the bias add and stage in VMEM scratch so the
    # largest activation intermediates are half-width and live-range bounded.
    xq = xq_ref[0].astype(compute_dtype)                           # (Lqp, Dp)
    q_scr[...] = (jnp.dot(xq, wq_ref[...], preferred_element_type=jnp.float32)
                  + bq_ref[...]).astype(compute_dtype)
    xk = xk_ref[0]                                                 # (Lkp, Dp) bf16
    kv_scr[...] = (jnp.dot(xk, wkv_ref[...], preferred_element_type=jnp.float32)
                   + bkv_ref[...]).astype(compute_dtype)

    # Zero the ctx scratch: its lane-pad columns (>= D) meet zero rows of wo,
    # but stale VMEM could hold NaN bit patterns (NaN * 0 = NaN).
    ctx_scr[...] = jnp.zeros_like(ctx_scr)

    if Lkp != Lk:  # key rows >= Lk are zero padding -> mask their scores
        kmask = lax.broadcasted_iota(jnp.int32, (Lqp, Lkp), 1) < Lk

    # Per-head attention.  Head loop stays unrolled (H is small); slices come
    # from the scratch refs.
    for h in range(H):
        c0 = h * hd
        qh = q_scr[:, c0:c0 + hd]                                  # (Lqp, hd)
        kh = kv_scr[:, c0:c0 + hd]                                 # (Lkp, hd)
        vh = kv_scr[:, Dp + c0:Dp + c0 + hd]                       # (Lkp, hd)

        s = lax.dot_general(qh, kh, (((1,), (1,)), ((), ())),
                            preferred_element_type=jnp.float32) * scale
        if Lkp != Lk:
            s = jnp.where(kmask, s, -1e30)
        s = s - jnp.max(s, axis=-1, keepdims=True)
        p = jnp.exp(s)
        p = p * pl.reciprocal(jnp.sum(p, axis=-1, keepdims=True), approx=True)

        ctx_scr[:, c0:c0 + hd] = jnp.dot(
            p.astype(compute_dtype), vh,
            preferred_element_type=jnp.float32).astype(compute_dtype)

    # Single out-projection matmul over all heads, then bias + residual.
    out = jnp.dot(ctx_scr[...], wo_ref[...], preferred_element_type=jnp.float32)
    o_ref[0] = out + bo_ref[...] + xq_ref[0]


# ---------------------------------------------------------------------------
# Offline weight fusion (compute ONCE per (edge_type, query_scale, key_scale)
# and reuse across forward calls -- these D x D matmuls would otherwise run in
# the XLA prologue of every invocation).
# ---------------------------------------------------------------------------
def prepare_hierarchical_aggregator(params, *, edge_type, query_scale, key_scale,
                                    num_heads, compute_dtype=jnp.bfloat16):
    qe = params["q_projs"][edge_type]
    ke = params["k_projs"][edge_type]
    mha = params["mha"]
    emb_q = params["scale_emb"][query_scale]
    emb_k = params["scale_emb"][key_scale]
    D = qe["w"].shape[0]
    assert D % num_heads == 0
    Dp = _round_up(D, 128)
    f32 = jnp.float32

    # Fold edge-type Linear + scale embedding into the MHA in_proj (f32):
    #   Q = (x + e) @ Wqe^T @ Wqi^T + (e @ Wf + bqe @ Wqi^T + bqi) = x @ Wf + bf
    wq_f = qe["w"].T @ mha["wq"].T
    bq_f = emb_q @ wq_f + qe["b"] @ mha["wq"].T + mha["bq"]
    wk_f = ke["w"].T @ mha["wk"].T
    bk_f = emb_k @ wk_f + ke["b"] @ mha["wk"].T + mha["bk"]
    wv_f = ke["w"].T @ mha["wv"].T
    bv_f = emb_k @ wv_f + ke["b"] @ mha["wv"].T + mha["bv"]
    wo_t = mha["wo"].T
    bo = mha["bo"]

    # Natural width D, lane-padded once to Dp (zero pads keep the math exact;
    # no per-head 128-lane inflation of the projection matmuls).
    pad2 = lambda w: jnp.pad(w, ((0, Dp - D), (0, Dp - D)))
    padc = lambda v: jnp.pad(v[None, :], ((0, 0), (0, Dp - D)))

    weights = (pad2(wq_f).astype(compute_dtype),                       # (Dp, Dp)
               padc(bq_f).astype(f32),                                 # (1, Dp)
               jnp.concatenate([pad2(wk_f), pad2(wv_f)], axis=1
                               ).astype(compute_dtype),                # (Dp, 2Dp)
               jnp.concatenate([padc(bk_f), padc(bv_f)], axis=1
                               ).astype(f32),                          # (1, 2Dp)
               pad2(wo_t).astype(compute_dtype),                       # (Dp, Dp)
               padc(bo).astype(f32))                                   # (1, Dp)

    return dict(D=D, Dp=Dp, num_heads=num_heads, head_dim=D // num_heads,
                compute_dtype=compute_dtype, weights=weights)


def _const_spec(shape):
    """Constant-index weight/bias block; single-buffered (the block index never
    changes, so default double-buffering would only waste VMEM)."""
    index_map = lambda b: (0,) * len(shape)
    try:
        return pl.BlockSpec(shape, index_map, pipeline_mode=pl.Buffered(1))
    except Exception:  # older jax without pipeline_mode / Buffered
        return pl.BlockSpec(shape, index_map)


def _vmem_limit_bytes():
    # Explicit scoped-VMEM limit: defaults (16/32 MiB) reject large blocks long
    # before VMEM is full; 3/4 of physical keeps headroom on v7x (64 MiB).
    try:
        cap = pltpu.get_tpu_info().vmem_capacity_bytes
    except Exception:
        cap = 64 * 1024 * 1024  # conservative fallback (v7x-sized)
    return int(min(cap * 3 // 4, 110 * 1024 * 1024))


# ---------------------------------------------------------------------------
# Apply: layout prep + pallas_call.  Batch is the (parallel) grid axis.
# ---------------------------------------------------------------------------
def hierarchical_aggregator_apply(query, key, fused):
    """query/key: (L, B, D) float32; fused: output of prepare_*()."""
    Lq, B, D = query.shape
    Lk = key.shape[0]
    assert D == fused["D"]
    Dp = fused["Dp"]
    H = fused["num_heads"]
    hd = fused["head_dim"]
    cdt = fused["compute_dtype"]
    weights = fused["weights"]

    # Sublane-align sequence lengths (16 rows/tile for bf16 operands).
    row_align = 8 * (4 // jnp.dtype(cdt).itemsize)
    Lqp = _round_up(Lq, row_align)
    Lkp = _round_up(Lk, row_align)

    # Batch-major layout, lane-pad D -> Dp, sublane-pad L -> Lp.
    # TODO(synk): a 3-D BlockSpec over the native (L, B, D) layout could let the
    # DMA engine do this relayout and save an HBM round trip for large inputs.
    xq = jnp.pad(jnp.transpose(query, (1, 0, 2)),
                 ((0, 0), (0, Lqp - Lq), (0, Dp - D)))                 # f32, residual
    xk = jnp.pad(jnp.transpose(key, (1, 0, 2)),
                 ((0, 0), (0, Lkp - Lk), (0, Dp - D))).astype(cdt)

    kernel = functools.partial(_hier_agg_kernel, hd, H, Lk, Lkp,
                               1.0 / float(hd) ** 0.5, cdt)

    # NOTE: one batch element per grid step.  For tiny Lq on v6e one could group
    # several batch elements per step to keep the 256-wide MXU fed; realistic
    # MIL bag sizes (Lq >= 256) already do.
    out = pl.pallas_call(
        kernel,
        out_shape=jax.ShapeDtypeStruct((B, Lqp, Dp), jnp.float32),
        grid=(B,),
        in_specs=[pl.BlockSpec((1, Lqp, Dp), lambda b: (b, 0, 0)),
                  pl.BlockSpec((1, Lkp, Dp), lambda b: (b, 0, 0)),
                  _const_spec(weights[0].shape), _const_spec(weights[1].shape),
                  _const_spec(weights[2].shape), _const_spec(weights[3].shape),
                  _const_spec(weights[4].shape), _const_spec(weights[5].shape)],
        out_specs=pl.BlockSpec((1, Lqp, Dp), lambda b: (b, 0, 0)),
        scratch_shapes=[pltpu.VMEM((Lqp, Dp), cdt),        # Q
                        pltpu.VMEM((Lkp, 2 * Dp), cdt),    # K | V
                        pltpu.VMEM((Lqp, Dp), cdt)],       # per-head contexts
        compiler_params=pltpu.CompilerParams(
            dimension_semantics=("parallel",),
            vmem_limit_bytes=_vmem_limit_bytes()),
    )(xq, xk, *weights)

    return jnp.transpose(out[:, :Lq, :D], (1, 0, 2))       # back to (Lq, B, D)


def hierarchical_aggregator(query, key, params, *, edge_type, query_scale,
                            key_scale, num_heads, compute_dtype=jnp.bfloat16):
    """Convenience one-shot wrapper; prefer prepare_* once + apply per call."""
    fused = prepare_hierarchical_aggregator(
        params, edge_type=edge_type, query_scale=query_scale,
        key_scale=key_scale, num_heads=num_heads, compute_dtype=compute_dtype)
    return hierarchical_aggregator_apply(query, key, fused)


# ---------------------------------------------------------------------------
# Pure-JAX reference (mirrors PyTorch nn.MultiheadAttention math, f32)
# ---------------------------------------------------------------------------
def ref_forward(query, key, params, *, edge_type, query_scale, key_scale, num_heads):
    Lq, B, D = query.shape
    Lk = key.shape[0]
    hd = D // num_heads
    qe = params["q_projs"][edge_type]
    ke = params["k_projs"][edge_type]
    mha = params["mha"]

    qx = query + params["scale_emb"][query_scale]
    kx = key + params["scale_emb"][key_scale]
    q = qx @ qe["w"].T + qe["b"]
    k = kx @ ke["w"].T + ke["b"]

    Q = q @ mha["wq"].T + mha["bq"]
    K = k @ mha["wk"].T + mha["bk"]
    V = k @ mha["wv"].T + mha["bv"]

    Qh = Q.reshape(Lq, B, num_heads, hd).transpose(1, 2, 0, 3)
    Kh = K.reshape(Lk, B, num_heads, hd).transpose(1, 2, 0, 3)
    Vh = V.reshape(Lk, B, num_heads, hd).transpose(1, 2, 0, 3)
    s = jnp.einsum("bhqd,bhkd->bhqk", Qh, Kh) / jnp.sqrt(jnp.float32(hd))
    p = jax.nn.softmax(s, axis=-1)
    o = jnp.einsum("bhqk,bhkd->bhqd", p, Vh)
    o = o.transpose(2, 0, 1, 3).reshape(Lq, B, D)
    out = o @ mha["wo"].T + mha["bo"]
    return query + out


# ---------------------------------------------------------------------------
# Deterministic parameter construction
# ---------------------------------------------------------------------------
def make_params(key, dim, hier_edge_types):
    keys = iter(jax.random.split(key, 64))

    def w(shape, scale=0.05):
        return scale * jax.random.normal(next(keys), shape, dtype=jnp.float32)

    return {
        "scale_emb": w((2, dim)),
        "q_projs": {et: {"w": w((dim, dim)), "b": w((dim,))}
                    for et in hier_edge_types},
        "k_projs": {et: {"w": w((dim, dim)), "b": w((dim,))}
                    for et in hier_edge_types},
        "mha": {
            "wq": w((dim, dim)), "bq": w((dim,)),
            "wk": w((dim, dim)), "bk": w((dim,)),
            "wv": w((dim, dim)), "bv": w((dim,)),
            "wo": w((dim, dim)), "bo": w((dim,)),
        },
    }


if __name__ == "__main__":
    DIM = 32
    NUM_HEADS = 2
    LQ, LK, B = 8, 8, 2
    EDGE_TYPES = ("coarse_to_fine", "fine_to_coarse")
    EDGE_TYPE = "coarse_to_fine"
    QUERY_SCALE, KEY_SCALE = 0, 1

    root = jax.random.PRNGKey(0)
    kp, kq, kk = jax.random.split(root, 3)
    params = make_params(kp, DIM, EDGE_TYPES)
    query = jax.random.normal(kq, (LQ, B, DIM), dtype=jnp.float32)
    key = jax.random.normal(kk, (LK, B, DIM), dtype=jnp.float32)

    # Fuse the weights once, reuse across calls.
    fused = prepare_hierarchical_aggregator(
        params, edge_type=EDGE_TYPE, query_scale=QUERY_SCALE,
        key_scale=KEY_SCALE, num_heads=NUM_HEADS)
    fused = jax.tree_util.tree_map(
        lambda x: jax.block_until_ready(x) if isinstance(x, jax.Array) else x, fused)

    out = hierarchical_aggregator_apply(query, key, fused)
    out = jax.block_until_ready(out)

    ref = ref_forward(
        query, key, params, edge_type=EDGE_TYPE,
        query_scale=QUERY_SCALE, key_scale=KEY_SCALE, num_heads=NUM_HEADS)

    assert out.shape == (LQ, B, DIM)
    max_err = float(jnp.max(jnp.abs(out - ref)))
    # bf16 MXU operands with f32 accumulation / f32 softmax & residual.
    assert jnp.allclose(out, ref, rtol=1e-2, atol=1e-2), max_err
    print("KERNEL_OK")
</pallas_src>

<mosaic_0001>
module attributes {stable_mosaic.version = 11 : i64} {
  func.func @_hier_agg_kernel(%arg0: i32, %arg1: memref<1x16x128xf32, #tpu.memory_space<vmem>>, %arg2: memref<1x16x128xbf16, #tpu.memory_space<vmem>>, %arg3: memref<128x128xbf16, #tpu.memory_space<vmem>>, %arg4: memref<1x128xf32, #tpu.memory_space<vmem>>, %arg5: memref<128x256xbf16, #tpu.memory_space<vmem>>, %arg6: memref<1x256xf32, #tpu.memory_space<vmem>>, %arg7: memref<128x128xbf16, #tpu.memory_space<vmem>>, %arg8: memref<1x128xf32, #tpu.memory_space<vmem>>, %arg9: memref<1x16x128xf32, #tpu.memory_space<vmem>>, %arg10: memref<16x128xbf16, #tpu.memory_space<vmem>>, %arg11: memref<16x256xbf16, #tpu.memory_space<vmem>>, %arg12: memref<16x128xbf16, #tpu.memory_space<vmem>>) attributes {dimension_semantics = [#tpu.dimension_semantics<parallel>], iteration_bounds = array<i64: 2>, scalar_prefetch = 0 : i64, scratch_operands = 3 : i64, tpu.core_type = #tpu.core_type<tc>, window_params = [{transform_indices = @transform_0, window_bounds = array<i64: 1, 16, 128>}, {transform_indices = @transform_1, window_bounds = array<i64: 1, 16, 128>}, {pipeline_mode = #tpu.pipeline_mode<synchronous>, transform_indices = @transform_2, window_bounds = array<i64: 128, 128>}, {pipeline_mode = #tpu.pipeline_mode<synchronous>, transform_indices = @transform_3, window_bounds = array<i64: 1, 128>}, {pipeline_mode = #tpu.pipeline_mode<synchronous>, transform_indices = @transform_4, window_bounds = array<i64: 128, 256>}, {pipeline_mode = #tpu.pipeline_mode<synchronous>, transform_indices = @transform_5, window_bounds = array<i64: 1, 256>}, {pipeline_mode = #tpu.pipeline_mode<synchronous>, transform_indices = @transform_6, window_bounds = array<i64: 128, 128>}, {pipeline_mode = #tpu.pipeline_mode<synchronous>, transform_indices = @transform_7, window_bounds = array<i64: 1, 128>}, {transform_indices = @transform_8, window_bounds = array<i64: 1, 16, 128>}]} {
    %c0 = arith.constant 0 : index
    %c0_0 = arith.constant 0 : index
    %c0_1 = arith.constant 0 : index
    %0 = vector.load %arg1[%c0, %c0_0, %c0_1] : memref<1x16x128xf32, #tpu.memory_space<vmem>>, vector<1x16x128xf32>
    %1 = vector.shape_cast %0 : vector<1x16x128xf32> to vector<16x128xf32>
    %2 = arith.truncf %1 : vector<16x128xf32> to vector<16x128xbf16>
    %c0_2 = arith.constant 0 : index
    %c0_3 = arith.constant 0 : index
    %3 = vector.load %arg3[%c0_2, %c0_3] : memref<128x128xbf16, #tpu.memory_space<vmem>>, vector<128x128xbf16>
    %cst = arith.constant dense<0.000000e+00> : vector<16x128xf32>
    %4 = tpu.matmul %2, %3, %cst {dimension_numbers = #tpu.dot_dimension_numbers<[1], [0], [0], [1], [0, 0, 1, 1], [], []>} : vector<16x128xbf16>, vector<128x128xbf16>, vector<16x128xf32> -> vector<16x128xf32>
    %c0_4 = arith.constant 0 : index
    %c0_5 = arith.constant 0 : index
    %5 = vector.load %arg4[%c0_4, %c0_5] : memref<1x128xf32, #tpu.memory_space<vmem>>, vector<1x128xf32>
    %6 = vector.broadcast %5 : vector<1x128xf32> to vector<16x128xf32>
    %7 = arith.addf %4, %6 : vector<16x128xf32>
    %8 = arith.truncf %7 : vector<16x128xf32> to vector<16x128xbf16>
    %c0_6 = arith.constant 0 : index
    %c0_7 = arith.constant 0 : index
    %9 = vector.load %arg10[%c0_6, %c0_7] : memref<16x128xbf16, #tpu.memory_space<vmem>>, vector<16x128xbf16>
    tpu.vector_store %arg10[%c0_6, %c0_7], %8 {strides = array<i32>} : memref<16x128xbf16, #tpu.memory_space<vmem>>, vector<16x128xbf16>,
    %c0_8 = arith.constant 0 : index
    %c0_9 = arith.constant 0 : index
    %c0_10 = arith.constant 0 : index
    %10 = vector.load %arg2[%c0_8, %c0_9, %c0_10] : memref<1x16x128xbf16, #tpu.memory_space<vmem>>, vector<1x16x128xbf16>
    %11 = vector.shape_cast %10 : vector<1x16x128xbf16> to vector<16x128xbf16>
    %c0_11 = arith.constant 0 : index
    %c0_12 = arith.constant 0 : index
    %12 = vector.load %arg5[%c0_11, %c0_12] : memref<128x256xbf16, #tpu.memory_space<vmem>>, vector<128x256xbf16>
    %cst_13 = arith.constant dense<0.000000e+00> : vector<16x256xf32>
    %13 = tpu.matmul %11, %12, %cst_13 {dimension_numbers = #tpu.dot_dimension_numbers<[1], [0], [0], [1], [0, 0, 1, 1], [], []>} : vector<16x128xbf16>, vector<128x256xbf16>, vector<16x256xf32> -> vector<16x256xf32>
    %c0_14 = arith.constant 0 : index
    %c0_15 = arith.constant 0 : index
    %14 = vector.load %arg6[%c0_14, %c0_15] : memref<1x256xf32, #tpu.memory_space<vmem>>, vector<1x256xf32>
    %15 = vector.broadcast %14 : vector<1x256xf32> to vector<16x256xf32>
    %16 = arith.addf %13, %15 : vector<16x256xf32>
    %17 = arith.truncf %16 : vector<16x256xf32> to vector<16x256xbf16>
    %c0_16 = arith.constant 0 : index
    %c0_17 = arith.constant 0 : index
    %18 = vector.load %arg11[%c0_16, %c0_17] : memref<16x256xbf16, #tpu.memory_space<vmem>>, vector<16x256xbf16>
    tpu.vector_store %arg11[%c0_16, %c0_17], %17 {strides = array<i32>} : memref<16x256xbf16, #tpu.memory_space<vmem>>, vector<16x256xbf16>,
    %cst_18 = arith.constant 0.000000e+00 : bf16
    %19 = vector.broadcast %cst_18 : bf16 to vector<16x128xbf16>
    %c0_19 = arith.constant 0 : index
    %c0_20 = arith.constant 0 : index
    %20 = vector.load %arg12[%c0_19, %c0_20] : memref<16x128xbf16, #tpu.memory_space<vmem>>, vector<16x128xbf16>
    tpu.vector_store %arg12[%c0_19, %c0_20], %19 {strides = array<i32>} : memref<16x128xbf16, #tpu.memory_space<vmem>>, vector<16x128xbf16>,
    %21 = tpu.iota {dimensions = array<i32: 1>} : vector<16x16xi32>
    %c8_i32 = arith.constant 8 : i32
    %22 = vector.broadcast %c8_i32 : i32 to vector<16x16xi32>
    %23 = arith.cmpi slt, %21, %22 : vector<16x16xi32>
    %c0_21 = arith.constant 0 : index
    %c0_22 = arith.constant 0 : index
    %24 = vector.load %arg10[%c0_21, %c0_22] : memref<16x128xbf16, #tpu.memory_space<vmem>>, vector<16x16xbf16>
    %c0_23 = arith.constant 0 : index
    %c0_24 = arith.constant 0 : index
    %25 = vector.load %arg11[%c0_23, %c0_24] : memref<16x256xbf16, #tpu.memory_space<vmem>>, vector<16x16xbf16>
    %c0_25 = arith.constant 0 : index
    %c128 = arith.constant 128 : index
    %26 = vector.load %arg11[%c0_25, %c128] : memref<16x256xbf16, #tpu.memory_space<vmem>>, vector<16x16xbf16>
    %cst_26 = arith.constant dense<0.000000e+00> : vector<16x16xf32>
    %27 = tpu.matmul %24, %25, %cst_26 {dimension_numbers = #tpu.dot_dimension_numbers<[1], [1], [0], [0], [0, 0, 1, 0], [], []>} : vector<16x16xbf16>, vector<16x16xbf16>, vector<16x16xf32> -> vector<16x16xf32>
    %cst_27 = arith.constant 2.500000e-01 : f32
    %28 = vector.broadcast %cst_27 : f32 to vector<16x16xf32>
    %29 = arith.mulf %27, %28 : vector<16x16xf32>
    %cst_28 = arith.constant -1.000000e+30 : f32
    %30 = vector.broadcast %cst_28 : f32 to vector<16x16xf32>
    %31 = arith.select %23, %29, %30 : vector<16x16xi1>, vector<16x16xf32>
    %cst_29 = arith.constant dense<0xFF800000> : vector<16xf32>
    %32 = vector.multi_reduction <maximumf>, %31, %cst_29 [1] : vector<16x16xf32> to vector<16xf32>
    %33 = vector.shape_cast %32 : vector<16xf32> to vector<16x1xf32>
    %34 = vector.broadcast %33 : vector<16x1xf32> to vector<16x16xf32>
    %35 = arith.subf %31, %34 : vector<16x16xf32>
    %36 = math.exp %35 : vector<16x16xf32>
    %cst_30 = arith.constant dense<0.000000e+00> : vector<16xf32>
    %37 = vector.multi_reduction <add>, %36, %cst_30 [1] : vector<16x16xf32> to vector<16xf32>
    %38 = vector.shape_cast %37 : vector<16xf32> to vector<16x1xf32>
    %39 = tpu.reciprocal %38 {approx = true} : vector<16x1xf32> -> vector<16x1xf32>
    %40 = vector.broadcast %39 : vector<16x1xf32> to vector<16x16xf32>
    %41 = arith.mulf %36, %40 : vector<16x16xf32>
    %42 = arith.truncf %41 : vector<16x16xf32> to vector<16x16xbf16>
    %cst_31 = arith.constant dense<0.000000e+00> : vector<16x16xf32>
    %43 = tpu.matmul %42, %26, %cst_31 {dimension_numbers = #tpu.dot_dimension_numbers<[1], [0], [0], [1], [0, 0, 1, 1], [], []>} : vector<16x16xbf16>, vector<16x16xbf16>, vector<16x16xf32> -> vector<16x16xf32>
    %44 = arith.truncf %43 : vector<16x16xf32> to vector<16x16xbf16>
    %c0_32 = arith.constant 0 : index
    %c0_33 = arith.constant 0 : index
    %45 = vector.load %arg12[%c0_32, %c0_33] : memref<16x128xbf16, #tpu.memory_space<vmem>>, vector<16x16xbf16>
    tpu.vector_store %arg12[%c0_32, %c0_33], %44 {strides = array<i32>} : memref<16x128xbf16, #tpu.memory_space<vmem>>, vector<16x16xbf16>,
    %c0_34 = arith.constant 0 : index
    %c16 = arith.constant 16 : index
    %46 = vector.load %arg10[%c0_34, %c16] : memref<16x128xbf16, #tpu.memory_space<vmem>>, vector<16x16xbf16>
    %c0_35 = arith.constant 0 : index
    %c16_36 = arith.constant 16 : index
    %47 = vector.load %arg11[%c0_35, %c16_36] : memref<16x256xbf16, #tpu.memory_space<vmem>>, vector<16x16xbf16>
    %c0_37 = arith.constant 0 : index
    %c144 = arith.constant 144 : index
    %48 = vector.load %arg11[%c0_37, %c144] : memref<16x256xbf16, #tpu.memory_space<vmem>>, vector<16x16xbf16>
    %cst_38 = arith.constant dense<0.000000e+00> : vector<16x16xf32>
    %49 = tpu.matmul %46, %47, %cst_38 {dimension_numbers = #tpu.dot_dimension_numbers<[1], [1], [0], [0], [0, 0, 1, 0], [], []>} : vector<16x16xbf16>, vector<16x16xbf16>, vector<16x16xf32> -> vector<16x16xf32>
    %cst_39 = arith.constant 2.500000e-01 : f32
    %50 = vector.broadcast %cst_39 : f32 to vector<16x16xf32>
    %51 = arith.mulf %49, %50 : vector<16x16xf32>
    %cst_40 = arith.constant -1.000000e+30 : f32
    %52 = vector.broadcast %cst_40 : f32 to vector<16x16xf32>
    %53 = arith.select %23, %51, %52 : vector<16x16xi1>, vector<16x16xf32>
    %cst_41 = arith.constant dense<0xFF800000> : vector<16xf32>
    %54 = vector.multi_reduction <maximumf>, %53, %cst_41 [1] : vector<16x16xf32> to vector<16xf32>
    %55 = vector.shape_cast %54 : vector<16xf32> to vector<16x1xf32>
    %56 = vector.broadcast %55 : vector<16x1xf32> to vector<16x16xf32>
    %57 = arith.subf %53, %56 : vector<16x16xf32>
    %58 = math.exp %57 : vector<16x16xf32>
    %cst_42 = arith.constant dense<0.000000e+00> : vector<16xf32>
    %59 = vector.multi_reduction <add>, %58, %cst_42 [1] : vector<16x16xf32> to vector<16xf32>
    %60 = vector.shape_cast %59 : vector<16xf32> to vector<16x1xf32>
    %61 = tpu.reciprocal %60 {approx = true} : vector<16x1xf32> -> vector<16x1xf32>
    %62 = vector.broadcast %61 : vector<16x1xf32> to vector<16x16xf32>
    %63 = arith.mulf %58, %62 : vector<16x16xf32>
    %64 = arith.truncf %63 : vector<16x16xf32> to vector<16x16xbf16>
    %cst_43 = arith.constant dense<0.000000e+00> : vector<16x16xf32>
    %65 = tpu.matmul %64, %48, %cst_43 {dimension_numbers = #tpu.dot_dimension_numbers<[1], [0], [0], [1], [0, 0, 1, 1], [], []>} : vector<16x16xbf16>, vector<16x16xbf16>, vector<16x16xf32> -> vector<16x16xf32>
    %66 = arith.truncf %65 : vector<16x16xf32> to vector<16x16xbf16>
    %c0_44 = arith.constant 0 : index
    %c16_45 = arith.constant 16 : index
    %67 = vector.load %arg12[%c0_44, %c16_45] : memref<16x128xbf16, #tpu.memory_space<vmem>>, vector<16x16xbf16>
    tpu.vector_store %arg12[%c0_44, %c16_45], %66 {strides = array<i32>} : memref<16x128xbf16, #tpu.memory_space<vmem>>, vector<16x16xbf16>,
    %c0_46 = arith.constant 0 : index
    %c0_47 = arith.constant 0 : index
    %68 = vector.load %arg12[%c0_46, %c0_47] : memref<16x128xbf16, #tpu.memory_space<vmem>>, vector<16x128xbf16>
    %c0_48 = arith.constant 0 : index
    %c0_49 = arith.constant 0 : index
    %69 = vector.load %arg7[%c0_48, %c0_49] : memref<128x128xbf16, #tpu.memory_space<vmem>>, vector<128x128xbf16>
    %cst_50 = arith.constant dense<0.000000e+00> : vector<16x128xf32>
    %70 = tpu.matmul %68, %69, %cst_50 {dimension_numbers = #tpu.dot_dimension_numbers<[1], [0], [0], [1], [0, 0, 1, 1], [], []>} : vector<16x128xbf16>, vector<128x128xbf16>, vector<16x128xf32> -> vector<16x128xf32>
    %c0_51 = arith.constant 0 : index
    %c0_52 = arith.constant 0 : index
    %71 = vector.load %arg8[%c0_51, %c0_52] : memref<1x128xf32, #tpu.memory_space<vmem>>, vector<1x128xf32>
    %72 = vector.broadcast %71 : vector<1x128xf32> to vector<16x128xf32>
    %73 = arith.addf %70, %72 : vector<16x128xf32>
    %c0_53 = arith.constant 0 : index
    %c0_54 = arith.constant 0 : index
    %c0_55 = arith.constant 0 : index
    %74 = vector.load %arg1[%c0_53, %c0_54, %c0_55] : memref<1x16x128xf32, #tpu.memory_space<vmem>>, vector<1x16x128xf32>
    %75 = vector.shape_cast %74 : vector<1x16x128xf32> to vector<16x128xf32>
    %76 = arith.addf %73, %75 : vector<16x128xf32>
    %c0_56 = arith.constant 0 : index
    %c0_57 = arith.constant 0 : index
    %c0_58 = arith.constant 0 : index
    %77 = vector.load %arg9[%c0_56, %c0_57, %c0_58] : memref<1x16x128xf32, #tpu.memory_space<vmem>>, vector<1x16x128xf32>
    %78 = vector.shape_cast %77 : vector<1x16x128xf32> to vector<16x128xf32>
    %79 = vector.shape_cast %76 : vector<16x128xf32> to vector<1x16x128xf32>
    tpu.vector_store %arg9[%c0_56, %c0_57, %c0_58], %79 {strides = array<i32>} : memref<1x16x128xf32, #tpu.memory_space<vmem>>, vector<1x16x128xf32>,
    return
  }
  func.func @transform_0(%arg0: i32) -> (i32, i32, i32) {
    %c0_i32 = arith.constant 0 : i32
    %c0_i32_0 = arith.constant 0 : i32
    %c0_i32_1 = arith.constant 0 : i32
    return %arg0, %c0_i32, %c0_i32_0 : i32, i32, i32
  }
  func.func @transform_1(%arg0: i32) -> (i32, i32, i32) {
    %c0_i32 = arith.constant 0 : i32
    %c0_i32_0 = arith.constant 0 : i32
    %c0_i32_1 = arith.constant 0 : i32
    return %arg0, %c0_i32, %c0_i32_0 : i32, i32, i32
  }
  func.func @transform_2(%arg0: i32) -> (i32, i32) {
    %c0_i32 = arith.constant 0 : i32
    %c0_i32_0 = arith.constant 0 : i32
    %c0_i32_1 = arith.constant 0 : i32
    return %c0_i32, %c0_i32_0 : i32, i32
  }
  func.func @transform_3(%arg0: i32) -> (i32, i32) {
    %c0_i32 = arith.constant 0 : i32
    %c0_i32_0 = arith.constant 0 : i32
    %c0_i32_1 = arith.constant 0 : i32
    return %c0_i32, %c0_i32_0 : i32, i32
  }
  func.func @transform_4(%arg0: i32) -> (i32, i32) {
    %c0_i32 = arith.constant 0 : i32
    %c0_i32_0 = arith.constant 0 : i32
    %c0_i32_1 = arith.constant 0 : i32
    return %c0_i32, %c0_i32_0 : i32, i32
  }
  func.func @transform_5(%arg0: i32) -> (i32, i32) {
    %c0_i32 = arith.constant 0 : i32
    %c0_i32_0 = arith.constant 0 : i32
    %c0_i32_1 = arith.constant 0 : i32
    return %c0_i32, %c0_i32_0 : i32, i32
  }
  func.func @transform_6(%arg0: i32) -> (i32, i32) {
    %c0_i32 = arith.constant 0 : i32
    %c0_i32_0 = arith.constant 0 : i32
    %c0_i32_1 = arith.constant 0 : i32
    return %c0_i32, %c0_i32_0 : i32, i32
  }
  func.func @transform_7(%arg0: i32) -> (i32, i32) {
    %c0_i32 = arith.constant 0 : i32
    %c0_i32_0 = arith.constant 0 : i32
    %c0_i32_1 = arith.constant 0 : i32
    return %c0_i32, %c0_i32_0 : i32, i32
  }
  func.func @transform_8(%arg0: i32) -> (i32, i32, i32) {
    %c0_i32 = arith.constant 0 : i32
    %c0_i32_0 = arith.constant 0 : i32
    %c0_i32_1 = arith.constant 0 : i32
    return %arg0, %c0_i32, %c0_i32_0 : i32, i32, i32
  }
}

</mosaic_0001>

<llo_original>
// kernel: tpu_custom_call.1
$region0: #{tpu_custom_call.1}
  #allocation0 [shape = 'u32[]', space=smem, size = 0x4, offset = 0x4, fixed_abs, tag = 'smem constant byte address 0x4 - core index']
  #allocation1 [shape = 'u32[144,128]{1,0:T(1,128)}', space=vmem, size = 0x12000, scoped, tag = 'internal scratch']
  #allocation2 [shape = 'bf16[16,128]{1,0:T(8,128)(2,1)}', space=vmem, size = 0x1000, scoped, tag = 'scratch operand']
  #allocation3 [shape = 'bf16[16,256]{1,0:T(8,128)(2,1)}', space=vmem, size = 0x2000, scoped, tag = 'scratch operand']
  #allocation4 [shape = 'bf16[16,128]{1,0:T(8,128)(2,1)}', space=vmem, size = 0x1000, scoped, tag = 'scratch operand']
  %s0 = inlined_call_operand.hbm [shape: f32[2,16,128], index: 0, kind: input, shape index: {}]
  %s1 = inlined_call_operand.hbm [shape: bf16[2,16,128], index: 1, kind: input, shape index: {}]
  %s2 = inlined_call_operand.hbm [shape: bf16[128,128], index: 2, kind: input, shape index: {}]
  %s3 = inlined_call_operand.vmem [shape: f32[1,128], index: 3, kind: input, shape index: {}]
  %s4 = inlined_call_operand.hbm [shape: bf16[128,256], index: 4, kind: input, shape index: {}]
  %s5 = inlined_call_operand.vmem [shape: f32[1,256], index: 5, kind: input, shape index: {}]
  %s6 = inlined_call_operand.hbm [shape: bf16[128,128], index: 6, kind: input, shape index: {}]
  %s7 = inlined_call_operand.vmem [shape: f32[1,128], index: 7, kind: input, shape index: {}]
  %s8 = inlined_call_operand.hbm [shape: f32[2,16,128], index: 8, kind: output, shape index: {}]
  %s9 = sld [smem:[#allocation0]]
  $region85: #{tpu_custom_call.1} parent=0
    _
  %s11 = ssub.s32 1, %s9
  %s12 = scalar_select 0, %s11, %s9
  $region1: #{tpu_custom_call.1} parent=0
    #allocation5 [shape = 'u8[16384]{0}', space=vmem, size = 0x4000, scoped, tag = 'input window, operand 0']
    #allocation6 [shape = 's32[2]{0}', space=sflag, size = 0x8, scoped, tag = 'scoped memory for tpu_custom_call.1']
    #allocation7 [shape = 's32[2]{0}', space=sflag, size = 0x8, scoped, tag = 'scoped memory for tpu_custom_call.1']
    #allocation8 [shape = 'u8[8192]{0}', space=vmem, size = 0x2000, scoped, tag = 'input window, operand 1']
    #allocation9 [shape = 's32[2]{0}', space=sflag, size = 0x8, scoped, tag = 'scoped memory for tpu_custom_call.1']
    #allocation10 [shape = 'u8[32768]{0}', space=vmem, size = 0x8000, scoped, tag = 'input window, operand 2, single buffered']
    #allocation11 [shape = 'u8[65536]{0}', space=vmem, size = 0x10000, scoped, tag = 'input window, operand 4, single buffered']
    #allocation12 [shape = 's32[1]{0}', space=sflag, size = 0x4, scoped, tag = 'scoped memory for tpu_custom_call.1']
    #allocation13 [shape = 'u8[32768]{0}', space=vmem, size = 0x8000, scoped, tag = 'input window, operand 6, single buffered']
    #allocation14 [shape = 'u8[16384]{0}', space=vmem, size = 0x4000, scoped, tag = 'output window, operand 0']
    %13 = vsyncpa [#allocation6], 0
    %s14 = scalar_lea.sflag [#allocation6], 1
    %15 = vsyncpa %s14, 0
    %16 = vsyncpa [#allocation9], 0
    %s17 = scalar_lea.sflag [#allocation9], 1
    %18 = vsyncpa %s17, 0
    %19 = vsyncpa [#allocation12], 0
    %20 = vsyncpa [#allocation7], 0
    %s21 = scalar_lea.sflag [#allocation7], 1
    %22 = vsyncpa %s21, 0
    loop: start=0, step=1, limit=4
    $region2: #{tpu_custom_call.1} parent=1 // loop_pre_header
      _
    $region3: #{tpu_custom_call.1} parent=1 // loop_header
      %s24 = sphi 0, %s28
      %p25 = scmp.ge.s32.totalorder %s24, 4
      %s34 = sphi 0, %s36
      %s37 = sphi 0, %s34
      %s38 = sphi 0, %s37
      %s54 = sphi 0, %s38
      %s60 = sphi 0, %s62
      %s63 = sphi 0, %s60
      %s64 = sphi 0, %s63
      %s80 = sphi 0, %s64
      %s84 = sphi 0, %s84
      %s86 = sphi 0, %s84
      %s87 = sphi 0, %s86
      %s101 = sphi 0, %s87
      %s105 = sphi 0, %s105
      %s107 = sphi 0, %s105
      %s108 = sphi 0, %s107
      %s122 = sphi 0, %s108
      %s126 = sphi 0, %s126
      %s128 = sphi 0, %s126
      %s129 = sphi 0, %s128
      %s143 = sphi 0, %s129
      %s147 = sphi 0, %s147
      %s149 = sphi 0, %s147
      %s150 = sphi 0, %s149
      %s164 = sphi 0, %s150
      %s168 = sphi 0, %s168
      %s170 = sphi 0, %s168
      %s171 = sphi 0, %s170
      %s185 = sphi 0, %s171
      %s189 = sphi 0, %s189
      %s191 = sphi 0, %s189
      %s192 = sphi 0, %s191
      %s206 = sphi 0, %s192
      %s212 = sphi 0, %s214
      %s215 = sphi 0, %s212
      %s216 = sphi 0, %s215
      %s232 = sphi 0, %s216
    $region4: #{tpu_custom_call.1} parent=1 // loop_header_branch
      %27 = sbr.rel (%p25) target = $region8
    $region5: #{tpu_custom_call.1} parent=1 // loop_body
      %s29 = ssub.s32 %s24, 1
      %s30 = ssub.s32 %s24, 2
      %s31 = sadd.s32 %s24, 1
      %s32 = ssub.s32 %s24, %s31
      %p33 = scmp.eq.s32.totalorder %s32, 0
      %s35 = sadd.s32 %s34, 1
      %s36 = scalar_select %p33, %s34, %s35
      %p39 = pneg %p33
      %p40 = scmp.eq.s32.totalorder %s24, 1
      %p41 = por %p39, %p40
      %p42 = scmp.ne.s32.totalorder %s34, %s37
      %p43 = scmp.eq.s32.totalorder %s24, 0
      %p44 = por %p42, %p43
      %p45 = scmp.ne.s32.totalorder %s34, %s37
      %p46 = scmp.eq.s32.totalorder %s29, 1
      %p47 = por %p45, %p46
      %p48 = scmp.ne.s32.totalorder %s37, %s38
      %p49 = scmp.eq.s32.totalorder %s29, 0
      %p50 = por %p48, %p49
      %p51 = scmp.ne.s32.totalorder %s37, %s38
      %p52 = scmp.eq.s32.totalorder %s30, 1
      %p53 = por %p51, %p52
      %p55 = scmp.ne.s32.totalorder %s38, %s54
      %p56 = scmp.eq.s32.totalorder %s30, 0
      %p57 = por %p55, %p56
      %s58 = ssub.s32 %s24, %s31
      %p59 = scmp.eq.s32.totalorder %s58, 0
      %s61 = sadd.s32 %s60, 1
      %s62 = scalar_select %p59, %s60, %s61
      %p65 = pneg %p59
      %p66 = scmp.eq.s32.totalorder %s24, 1
      %p67 = por %p65, %p66
      %p68 = scmp.ne.s32.totalorder %s60, %s63
      %p69 = scmp.eq.s32.totalorder %s24, 0
      %p70 = por %p68, %p69
      %p71 = scmp.ne.s32.totalorder %s60, %s63
      %p72 = scmp.eq.s32.totalorder %s29, 1
      %p73 = por %p71, %p72
      %p74 = scmp.ne.s32.totalorder %s63, %s64
      %p75 = scmp.eq.s32.totalorder %s29, 0
      %p76 = por %p74, %p75
      %p77 = scmp.ne.s32.totalorder %s63, %s64
      %p78 = scmp.eq.s32.totalorder %s30, 1
      %p79 = por %p77, %p78
      %p81 = scmp.ne.s32.totalorder %s64, %s80
      %p82 = scmp.eq.s32.totalorder %s30, 0
      %p83 = por %p81, %p82
      %s85 = sadd.s32 %s84, 1
      %p88 = scmp.eq.s32.totalorder %s24, 1
      %p89 = scmp.ne.s32.totalorder %s84, %s86
      %p90 = scmp.eq.s32.totalorder %s24, 0
      %p91 = por %p89, %p90
      %p92 = scmp.ne.s32.totalorder %s84, %s86
      %p93 = scmp.eq.s32.totalorder %s29, 1
      %p94 = por %p92, %p93
      %p95 = scmp.ne.s32.totalorder %s86, %s87
      %p96 = scmp.eq.s32.totalorder %s29, 0
      %p97 = por %p95, %p96
      %p98 = scmp.ne.s32.totalorder %s86, %s87
      %p99 = scmp.eq.s32.totalorder %s30, 1
      %p100 = por %p98, %p99
      %p102 = scmp.ne.s32.totalorder %s87, %s101
      %p103 = scmp.eq.s32.totalorder %s30, 0
      %p104 = por %p102, %p103
      %s106 = sadd.s32 %s105, 1
      %p109 = scmp.eq.s32.totalorder %s24, 1
      %p110 = scmp.ne.s32.totalorder %s105, %s107
      %p111 = scmp.eq.s32.totalorder %s24, 0
      %p112 = por %p110, %p111
      %p113 = scmp.ne.s32.totalorder %s105, %s107
      %p114 = scmp.eq.s32.totalorder %s29, 1
      %p115 = por %p113, %p114
      %p116 = scmp.ne.s32.totalorder %s107, %s108
      %p117 = scmp.eq.s32.totalorder %s29, 0
      %p118 = por %p116, %p117
      %p119 = scmp.ne.s32.totalorder %s107, %s108
      %p120 = scmp.eq.s32.totalorder %s30, 1
      %p121 = por %p119, %p120
      %p123 = scmp.ne.s32.totalorder %s108, %s122
      %p124 = scmp.eq.s32.totalorder %s30, 0
      %p125 = por %p123, %p124
      %s127 = sadd.s32 %s126, 1
      %p130 = scmp.eq.s32.totalorder %s24, 1
      %p131 = scmp.ne.s32.totalorder %s126, %s128
      %p132 = scmp.eq.s32.totalorder %s24, 0
      %p133 = por %p131, %p132
      %p134 = scmp.ne.s32.totalorder %s126, %s128
      %p135 = scmp.eq.s32.totalorder %s29, 1
      %p136 = por %p134, %p135
      %p137 = scmp.ne.s32.totalorder %s128, %s129
      %p138 = scmp.eq.s32.totalorder %s29, 0
      %p139 = por %p137, %p138
      %p140 = scmp.ne.s32.totalorder %s128, %s129
      %p141 = scmp.eq.s32.totalorder %s30, 1
      %p142 = por %p140, %p141
      %p144 = scmp.ne.s32.totalorder %s129, %s143
      %p145 = scmp.eq.s32.totalorder %s30, 0
      %p146 = por %p144, %p145
      %s148 = sadd.s32 %s147, 1
      %p151 = scmp.eq.s32.totalorder %s24, 1
      %p152 = scmp.ne.s32.totalorder %s147, %s149
      %p153 = scmp.eq.s32.totalorder %s24, 0
      %p154 = por %p152, %p153
      %p155 = scmp.ne.s32.totalorder %s147, %s149
      %p156 = scmp.eq.s32.totalorder %s29, 1
      %p157 = por %p155, %p156
      %p158 = scmp.ne.s32.totalorder %s149, %s150
      %p159 = scmp.eq.s32.totalorder %s29, 0
      %p160 = por %p158, %p159
      %p161 = scmp.ne.s32.totalorder %s149, %s150
      %p162 = scmp.eq.s32.totalorder %s30, 1
      %p163 = por %p161, %p162
      %p165 = scmp.ne.s32.totalorder %s150, %s164
      %p166 = scmp.eq.s32.totalorder %s30, 0
      %p167 = por %p165, %p166
      %s169 = sadd.s32 %s168, 1
      %p172 = scmp.eq.s32.totalorder %s24, 1
      %p173 = scmp.ne.s32.totalorder %s168, %s170
      %p174 = scmp.eq.s32.totalorder %s24, 0
      %p175 = por %p173, %p174
      %p176 = scmp.ne.s32.totalorder %s168, %s170
      %p177 = scmp.eq.s32.totalorder %s29, 1
      %p178 = por %p176, %p177
      %p179 = scmp.ne.s32.totalorder %s170, %s171
      %p180 = scmp.eq.s32.totalorder %s29, 0
      %p181 = por %p179, %p180
      %p182 = scmp.ne.s32.totalorder %s170, %s171
      %p183 = scmp.eq.s32.totalorder %s30, 1
      %p184 = por %p182, %p183
      %p186 = scmp.ne.s32.totalorder %s171, %s185
      %p187 = scmp.eq.s32.totalorder %s30, 0
      %p188 = por %p186, %p187
      %s190 = sadd.s32 %s189, 1
      %p193 = scmp.eq.s32.totalorder %s24, 1
      %p194 = scmp.ne.s32.totalorder %s189, %s191
      %p195 = scmp.eq.s32.totalorder %s24, 0
      %p196 = por %p194, %p195
      %p197 = scmp.ne.s32.totalorder %s189, %s191
      %p198 = scmp.eq.s32.totalorder %s29, 1
      %p199 = por %p197, %p198
      %p200 = scmp.ne.s32.totalorder %s191, %s192
      %p201 = scmp.eq.s32.totalorder %s29, 0
      %p202 = por %p200, %p201
      %p203 = scmp.ne.s32.totalorder %s191, %s192
      %p204 = scmp.eq.s32.totalorder %s30, 1
      %p205 = por %p203, %p204
      %p207 = scmp.ne.s32.totalorder %s192, %s206
      %p208 = scmp.eq.s32.totalorder %s30, 0
      %p209 = por %p207, %p208
      %s210 = ssub.s32 %s24, %s31
      %p211 = scmp.eq.s32.totalorder %s210, 0
      %s213 = sadd.s32 %s212, 1
      %s214 = scalar_select %p211, %s212, %s213
      %p217 = pneg %p211
      %p218 = scmp.eq.s32.totalorder %s24, 1
      %p219 = por %p217, %p218
      %p220 = scmp.ne.s32.totalorder %s212, %s215
      %p221 = scmp.eq.s32.totalorder %s24, 0
      %p222 = por %p220, %p221
      %p223 = scmp.ne.s32.totalorder %s212, %s215
      %p224 = scmp.eq.s32.totalorder %s29, 1
      %p225 = por %p223, %p224
      %p226 = scmp.ne.s32.totalorder %s215, %s216
      %p227 = scmp.eq.s32.totalorder %s29, 0
      %p228 = por %p226, %p227
      %p229 = scmp.ne.s32.totalorder %s215, %s216
      %p230 = scmp.eq.s32.totalorder %s30, 1
      %p231 = por %p229, %p230
      %p233 = scmp.ne.s32.totalorder %s216, %s232
      %p234 = scmp.eq.s32.totalorder %s30, 0
      %p235 = por %p233, %p234
      %p236 = scmp.le.s32.totalorder 1, %s24
      %p237 = scmp.lt.s32.totalorder %s24, 3
      %p238 = pnand %p236, %p237
      %p239 = pneg %p238
      // Predicated region
      $region9: #{tpu_custom_call.1} parent=5 // pred_check
        _
      $region10: #{tpu_custom_call.1} parent=5 // pred_check_branch
        %241 = sbr.rel (%p238) target = $region12
      $region11: #{tpu_custom_call.1} parent=5 // pred_region
        %s242 = ssub.s32 %s24, 1
        // Predicated region
        $region13: #{tpu_custom_call.1} parent=11 // pred_check
          %p243 = pneg %p97
        $region14: #{tpu_custom_call.1} parent=11 // pred_check_branch
          %245 = sbr.rel (%p243) target = $region16
        $region15: #{tpu_custom_call.1} parent=11 // pred_region
          %s247 = ssub.s32 1024, 1024
          %248 = vsyncadd [#allocation9], %s247
          %s249 = sshll.u32 [#allocation10], 4
          %s250 = int_to_ptr.vmem [resolvable:$true] %s249
          %255 = dma.hbm_to_vmem [thread:$0]  %s2, 1024, %s250, [#allocation9], 64, 64, 4
        $region16: #{tpu_custom_call.1} parent=11 // pred_fallthru
          _
        // Predicated region
        $region17: #{tpu_custom_call.1} parent=11 // pred_check
          %p256 = pneg %p118
        $region18: #{tpu_custom_call.1} parent=11 // pred_check_branch
          %258 = sbr.rel (%p256) target = $region20
        $region19: #{tpu_custom_call.1} parent=11 // pred_region
          _
        $region20: #{tpu_custom_call.1} parent=11 // pred_fallthru
          _
        // Predicated region
        $region21: #{tpu_custom_call.1} parent=11 // pred_check
          %p259 = pneg %p139
        $region22: #{tpu_custom_call.1} parent=11 // pred_check_branch
          %261 = sbr.rel (%p259) target = $region24
        $region23: #{tpu_custom_call.1} parent=11 // pred_region
          %s263 = ssub.s32 2048, 2048
          %264 = vsyncadd [#allocation12], %s263
          %s265 = sshll.u32 [#allocation11], 4
          %s266 = int_to_ptr.vmem [resolvable:$true] %s265
          %271 = dma.hbm_to_vmem [thread:$0]  %s4, 2048, %s266, [#allocation12], 128, 128, 8
        $region24: #{tpu_custom_call.1} parent=11 // pred_fallthru
          _
        // Predicated region
        $region25: #{tpu_custom_call.1} parent=11 // pred_check
          %p272 = pneg %p160
        $region26: #{tpu_custom_call.1} parent=11 // pred_check_branch
          %274 = sbr.rel (%p272) target = $region28
        $region27: #{tpu_custom_call.1} parent=11 // pred_region
          _
        $region28: #{tpu_custom_call.1} parent=11 // pred_fallthru
          _
        // Predicated region
        $region29: #{tpu_custom_call.1} parent=11 // pred_check
          %p275 = pneg %p181
        $region30: #{tpu_custom_call.1} parent=11 // pred_check_branch
          %277 = sbr.rel (%p275) target = $region32
        $region31: #{tpu_custom_call.1} parent=11 // pred_region
          %s279 = ssub.s32 1024, 1024
          %280 = vsyncadd [#allocation12], %s279
          %s281 = sshll.u32 [#allocation13], 4
          %s282 = int_to_ptr.vmem [resolvable:$true] %s281
          %287 = dma.hbm_to_vmem [thread:$0]  %s6, 1024, %s282, [#allocation12], 64, 64, 4
        $region32: #{tpu_custom_call.1} parent=11 // pred_fallthru
          _
        // Predicated region
        $region33: #{tpu_custom_call.1} parent=11 // pred_check
          %p288 = pneg %p202
        $region34: #{tpu_custom_call.1} parent=11 // pred_check_branch
          %290 = sbr.rel (%p288) target = $region36
        $region35: #{tpu_custom_call.1} parent=11 // pred_region
          _
        $region36: #{tpu_custom_call.1} parent=11 // pred_fallthru
          _
      $region12: #{tpu_custom_call.1} parent=5 // pred_fallthru
        _
      %p291 = scmp.lt.s32.totalorder %s24, 2
      // Predicated region
      $region37: #{tpu_custom_call.1} parent=5 // pred_check
        %p292 = pneg %p291
      $region38: #{tpu_custom_call.1} parent=5 // pred_check_branch
        %294 = sbr.rel (%p292) target = $region40
      $region39: #{tpu_custom_call.1} parent=5 // pred_region
        // Predicated region
        $region41: #{tpu_custom_call.1} parent=39 // pred_check
          %p295 = pneg %p44
        $region42: #{tpu_custom_call.1} parent=39 // pred_check_branch
          %297 = sbr.rel (%p295) target = $region44
        $region43: #{tpu_custom_call.1} parent=39 // pred_region
          %s298 = sand.u32 %s34, 1
          %s299 = scalar_lea.sflag [#allocation6], %s298
          %s300 = sand.u32 %s34, 1
          %s301 = smul.addr %s300, 16
          %s302 = scalar_lea.vmem [#allocation5], %s301
          %s304 = ssub.s32 256, 256
          %305 = vsyncadd %s299, %s304
          %s306 = smul.addr %s24, 2
          %s307 = smul.addr %s306, 128
          %s308 = scalar_lea.hbm %s0, %s307
          %s309 = sshll.u32 %s302, 4
          %s310 = int_to_ptr.vmem [resolvable:$true] %s309
          %315 = dma.hbm_to_vmem [thread:$0]  %s308, 256, %s310, %s299, 128, 128, 8
        $region44: #{tpu_custom_call.1} parent=39 // pred_fallthru
          _
        // Predicated region
        $region45: #{tpu_custom_call.1} parent=39 // pred_check
          %p316 = pneg %p70
        $region46: #{tpu_custom_call.1} parent=39 // pred_check_branch
          %318 = sbr.rel (%p316) target = $region48
        $region47: #{tpu_custom_call.1} parent=39 // pred_region
          %s319 = sand.u32 %s24, 1
          %s320 = scalar_lea.sflag [#allocation9], %s319
          %s321 = sand.u32 %s60, 1
          %s322 = smul.addr %s321, 8
          %s323 = scalar_lea.vmem [#allocation8], %s322
          %s325 = ssub.s32 128, 128
          %326 = vsyncadd %s320, %s325
          %s327 = smul.addr %s24, 2
          %s328 = smul.addr %s327, 64
          %s329 = scalar_lea.hbm %s1, %s328
          %s330 = sshll.u32 %s323, 4
          %s331 = int_to_ptr.vmem [resolvable:$true] %s330
          %336 = dma.hbm_to_vmem [thread:$0]  %s329, 128, %s331, %s320, 64, 64, 4
        $region48: #{tpu_custom_call.1} parent=39 // pred_fallthru
          _
      $region40: #{tpu_custom_call.1} parent=5 // pred_fallthru
        _
      %p337 = scmp.le.s32.totalorder 1, %s24
      %p338 = scmp.lt.s32.totalorder %s24, 3
      %p339 = pnand %p337, %p338
      %p340 = pneg %p339
      // Predicated region
      $region49: #{tpu_custom_call.1} parent=5 // pred_check
        _
      $region50: #{tpu_custom_call.1} parent=5 // pred_check_branch
        %342 = sbr.rel (%p339) target = $region52
      $region51: #{tpu_custom_call.1} parent=5 // pred_region
        %s343 = ssub.s32 %s24, 1
        %s344 = sand.u32 %s37, 1
        %s345 = scalar_lea.sflag [#allocation6], %s344
        %s346 = sand.u32 %s37, 1
        %s347 = smul.addr %s346, 16
        %s348 = scalar_lea.vmem [#allocation5], %s347
        // Predicated region
        $region53: #{tpu_custom_call.1} parent=51 // pred_check
          %p349 = pneg %p50
        $region54: #{tpu_custom_call.1} parent=51 // pred_check_branch
          %351 = sbr.rel (%p349) target = $region56
        $region55: #{tpu_custom_call.1} parent=51 // pred_region
          %352 = dma.done %s345, 256
        $region56: #{tpu_custom_call.1} parent=51 // pred_fallthru
          _
        %s353 = sand.u32 %s29, 1
        %s354 = scalar_lea.sflag [#allocation9], %s353
        %s355 = sand.u32 %s63, 1
        %s356 = smul.addr %s355, 8
        %s357 = scalar_lea.vmem [#allocation8], %s356
        // Predicated region
        $region57: #{tpu_custom_call.1} parent=51 // pred_check
          %p358 = pneg %p76
        $region58: #{tpu_custom_call.1} parent=51 // pred_check_branch
          %360 = sbr.rel (%p358) target = $region60
        $region59: #{tpu_custom_call.1} parent=51 // pred_region
          %361 = dma.done %s354, 128
        $region60: #{tpu_custom_call.1} parent=51 // pred_fallthru
          _
        // Predicated region
        $region61: #{tpu_custom_call.1} parent=51 // pred_check
          %p362 = pneg %p97
        $region62: #{tpu_custom_call.1} parent=51 // pred_check_branch
          %364 = sbr.rel (%p362) target = $region64
        $region63: #{tpu_custom_call.1} parent=51 // pred_region
          %365 = dma.done [#allocation9], 1024
        $region64: #{tpu_custom_call.1} parent=51 // pred_fallthru
          _
        // Predicated region
        $region65: #{tpu_custom_call.1} parent=51 // pred_check
          %p366 = pneg %p139
        $region66: #{tpu_custom_call.1} parent=51 // pred_check_branch
          %368 = sbr.rel (%p366) target = $region68
        $region67: #{tpu_custom_call.1} parent=51 // pred_region
          %369 = dma.done [#allocation12], 2048
        $region68: #{tpu_custom_call.1} parent=51 // pred_fallthru
          _
        // Predicated region
        $region69: #{tpu_custom_call.1} parent=51 // pred_check
          %p370 = pneg %p181
        $region70: #{tpu_custom_call.1} parent=51 // pred_check_branch
          %372 = sbr.rel (%p370) target = $region72
        $region71: #{tpu_custom_call.1} parent=51 // pred_region
          %373 = dma.done [#allocation12], 1024
        $region72: #{tpu_custom_call.1} parent=51 // pred_fallthru
          _
        %s374 = sand.u32 %s37, 1
        %s375 = scalar_lea.sflag [#allocation6], %s374
        %s376 = sand.u32 %s37, 1
        %s377 = smul.addr %s376, 16
        %s378 = scalar_lea.vmem [#allocation5], %s377
        %p379 = pneg %p50
        %p380 = pneg %p47
        %s381 = sand.u32 %s29, 1
        %s382 = scalar_lea.sflag [#allocation9], %s381
        %s383 = sand.u32 %s63, 1
        %s384 = smul.addr %s383, 8
        %s385 = scalar_lea.vmem [#allocation8], %s384
        %p386 = pneg %p76
        %p387 = pneg %p73
        %p388 = pneg %p97
        %p389 = pneg %p94
        %p390 = pneg %p118
        %p391 = pneg %p115
        %p392 = pneg %p139
        %p393 = pneg %p136
        %p394 = pneg %p160
        %p395 = pneg %p157
        %p396 = pneg %p181
        %p397 = pneg %p178
        %p398 = pneg %p202
        %p399 = pneg %p199
        %p400 = pneg %p228
        %p401 = pneg %p225
        %s402 = sand.u32 %s215, 1
        %s403 = scalar_lea.sflag [#allocation7], %s402
        %s404 = sand.u32 %s215, 1
        %s405 = smul.addr %s404, 16
        %s406 = scalar_lea.vmem [#allocation14], %s405
        %v408 = vld [vmem:[%s348] sm:$0xff]
        %v409 = vld [vmem:[%s348 + $0x8] sm:$0xff]
        %v410 = vpack.c.bf16 %v409, %v408
        %v411 = vld [vmem:[#allocation10] sm:$0xf]
        %v412 = vld [vmem:[#allocation10 + $0x4] sm:$0xf]
        %v413 = vld [vmem:[#allocation10 + $0x8] sm:$0xf]
        %v414 = vld [vmem:[#allocation10 + $0xc] sm:$0xf]
        %v415 = vld [vmem:[#allocation10 + $0x10] sm:$0xf]
        %v416 = vld [vmem:[#allocation10 + $0x14] sm:$0xf]
        %v417 = vld [vmem:[#allocation10 + $0x18] sm:$0xf]
        %v418 = vld [vmem:[#allocation10 + $0x1c] sm:$0xf]
        %v419 = vld [vmem:[#allocation10 + $0x20] sm:$0xf]
        %v420 = vld [vmem:[#allocation10 + $0x24] sm:$0xf]
        %v421 = vld [vmem:[#allocation10 + $0x28] sm:$0xf]
        %v422 = vld [vmem:[#allocation10 + $0x2c] sm:$0xf]
        %v423 = vld [vmem:[#allocation10 + $0x30] sm:$0xf]
        %v424 = vld [vmem:[#allocation10 + $0x34] sm:$0xf]
        %v425 = vld [vmem:[#allocation10 + $0x38] sm:$0xf]
        %v426 = vld [vmem:[#allocation10 + $0x3c] sm:$0xf]
        %v427 = vld [vmem:[%s3] sm:$0x1]
        %v429 = vlaneseq
        %v430 = vshrl.u32 %v429, 7
        %v431 = vsub.s32 0, %v430
        %v432 = vrot.slane %v427, %v431
        %v450 = vunpack.c.l.b16 %v411
        %v451 = vunpack.c.l.b16 %v412
        %v452 = vunpack.c.l.b16 %v413
        %v453 = vunpack.c.l.b16 %v414
        %v454 = vunpack.c.l.b16 %v415
        %v455 = vunpack.c.l.b16 %v416
        %v456 = vunpack.c.l.b16 %v417
        %v457 = vunpack.c.l.b16 %v418
        %v458 = vunpack.c.l.b16 %v419
        %v459 = vunpack.c.l.b16 %v420
        %v460 = vunpack.c.l.b16 %v421
        %v461 = vunpack.c.l.b16 %v422
        %v462 = vunpack.c.l.b16 %v423
        %v463 = vunpack.c.l.b16 %v424
        %v464 = vunpack.c.l.b16 %v425
        %v465 = vunpack.c.l.b16 %v426
        %v466 = vpack.c.b16 %v451, %v450
        %v467 = vpack.c.b16 %v453, %v452
        %v468 = vpack.c.b16 %v455, %v454
        %v469 = vpack.c.b16 %v457, %v456
        %v470 = vpack.c.b16 %v459, %v458
        %v471 = vpack.c.b16 %v461, %v460
        %v472 = vpack.c.b16 %v463, %v462
        %v473 = vpack.c.b16 %v465, %v464
        %482 = vmatprep.subr.bf16.mxu0 0
        %483 = vmatpush1.bf16.msra.mxu0 %v473
        %484 = vmatprep.subr.bf16.mxu0 0
        %485 = vmatpush1.bf16.msra.mxu0 %v472
        %486 = vmatprep.subr.bf16.mxu0 0
        %487 = vmatpush1.bf16.msra.mxu0 %v471
        %488 = vmatprep.subr.bf16.mxu0 0
        %489 = vmatpush1.bf16.msra.mxu0 %v470
        %490 = vmatprep.subr.bf16.mxu0 0
        %491 = vmatpush1.bf16.msra.mxu0 %v469
        %492 = vmatprep.subr.bf16.mxu0 0
        %493 = vmatpush1.bf16.msra.mxu0 %v468
        %494 = vmatprep.subr.bf16.mxu0 0
        %495 = vmatpush1.bf16.msra.mxu0 %v467
        %496 = vmatprep.subr.bf16.mxu0 0
        %497 = vmatpush1.bf16.msra.mxu0 %v466
        %498 = vmatprep.subr.bf16.mxu0 0
        %499 = vmatpush2.bf16.msra.mxu0 0
        %500 = vmatprep.subr.bf16.mxu0 0
        %501 = vmatpush2.bf16.msra.mxu0 0
        %502 = vmatprep.subr.bf16.mxu0 0
        %503 = vmatpush2.bf16.msra.mxu0 0
        %504 = vmatprep.subr.bf16.mxu0 0
        %505 = vmatpush2.bf16.msra.mxu0 0
        %506 = vmatprep.subr.bf16.mxu0 0
        %507 = vmatpush2.bf16.msra.mxu0 0
        %508 = vmatprep.subr.bf16.mxu0 0
        %509 = vmatpush2.bf16.msra.mxu0 0
        %510 = vmatprep.subr.bf16.mxu0 0
        %511 = vmatpush2.bf16.msra.mxu0 0
        %512 = vmatprep.subr.bf16.mxu0 0
        %513 = vmatpush2.bf16.msra.mxu0 0
        %514 = vmatprep.mubr.bf16.mxu0 0
        %515 = vmatmul.mubr.bf16.gmra.mxu0 %v410
        %v516 = vpop.f32.mrf.mxu0
        %v517 = vadd.f32 %v432, %v516
        %v518 = vpop.f32.mrf.mxu0
        %v519 = vpop.f32.mrf.mxu0
        %v520 = vadd.f32 %v432, %v519
        %v521 = vpop.f32.mrf.mxu0
        %522 = vdwg.mxu0
        %v523 = vpack.c.bf16 %v520, %v517
        %v525 = vunpack.c.l.b16 %v523
        %v526 = vunpack.c.h.b16 %v523
        %v527 = vpack.c.b16 %v525, %v525
        %v528 = vpack.c.b16 %v526, %v526
        %531 = vst [vmem:[#allocation2] sm:$0xf] %v527
        %532 = vst [vmem:[#allocation2 + $0x4] sm:$0xf] %v528
        %v533 = vld [vmem:[%s357] sm:$0xf]
        %v534 = vld [vmem:[%s357 + $0x4] sm:$0xf]
        %v535 = vld [vmem:[#allocation11] sm:$0xff]
        %v536 = vld [vmem:[#allocation11 + $0x8] sm:$0xff]
        %v537 = vld [vmem:[#allocation11 + $0x10] sm:$0xff]
        %v538 = vld [vmem:[#allocation11 + $0x18] sm:$0xff]
        %v539 = vld [vmem:[#allocation11 + $0x20] sm:$0xff]
        %v540 = vld [vmem:[#allocation11 + $0x28] sm:$0xff]
        %v541 = vld [vmem:[#allocation11 + $0x30] sm:$0xff]
        %v542 = vld [vmem:[#allocation11 + $0x38] sm:$0xff]
        %v543 = vld [vmem:[#allocation11 + $0x40] sm:$0xff]
        %v544 = vld [vmem:[#allocation11 + $0x48] sm:$0xff]
        %v545 = vld [vmem:[#allocation11 + $0x50] sm:$0xff]
        %v546 = vld [vmem:[#allocation11 + $0x58] sm:$0xff]
        %v547 = vld [vmem:[#allocation11 + $0x60] sm:$0xff]
        %v548 = vld [vmem:[#allocation11 + $0x68] sm:$0xff]
        %v549 = vld [vmem:[#allocation11 + $0x70] sm:$0xff]
        %v550 = vld [vmem:[#allocation11 + $0x78] sm:$0xff]
        %v551 = vld [vmem:[%s5] sm:$0x3]
        %v553 = vlaneseq
        %v554 = vshrl.u32 %v553, 7
        %v555 = vsub.s32 0, %v554
        %v556 = vrot.slane %v551, %v555
        %v557 = vlaneseq
        %v558 = vshrl.u32 %v557, 7
        %v559 = vsub.s32 1, %v558
        %v560 = vrot.slane %v551, %v559
        %v565 = vunpack.c.l.b16 %v533
        %v566 = vunpack.c.l.b16 %v534
        %v567 = vpack.c.b16 %v566, %v565
        %v585 = vunpack.c.l.b16 %v535
        %v586 = vunpack.c.h.b16 %v535
        %v587 = vunpack.c.l.b16 %v536
        %v588 = vunpack.c.h.b16 %v536
        %v589 = vunpack.c.l.b16 %v537
        %v590 = vunpack.c.h.b16 %v537
        %v591 = vunpack.c.l.b16 %v538
        %v592 = vunpack.c.h.b16 %v538
        %v593 = vunpack.c.l.b16 %v539
        %v594 = vunpack.c.h.b16 %v539
        %v595 = vunpack.c.l.b16 %v540
        %v596 = vunpack.c.h.b16 %v540
        %v597 = vunpack.c.l.b16 %v541
        %v598 = vunpack.c.h.b16 %v541
        %v599 = vunpack.c.l.b16 %v542
        %v600 = vunpack.c.h.b16 %v542
        %v601 = vunpack.c.l.b16 %v543
        %v602 = vunpack.c.h.b16 %v543
        %v603 = vunpack.c.l.b16 %v544
        %v604 = vunpack.c.h.b16 %v544
        %v605 = vunpack.c.l.b16 %v545
        %v606 = vunpack.c.h.b16 %v545
        %v607 = vunpack.c.l.b16 %v546
        %v608 = vunpack.c.h.b16 %v546
        %v609 = vunpack.c.l.b16 %v547
        %v610 = vunpack.c.h.b16 %v547
        %v611 = vunpack.c.l.b16 %v548
        %v612 = vunpack.c.h.b16 %v548
        %v613 = vunpack.c.l.b16 %v549
        %v614 = vunpack.c.h.b16 %v549
        %v615 = vunpack.c.l.b16 %v550
        %v616 = vunpack.c.h.b16 %v550
        %v617 = vpack.c.b16 %v587, %v585
        %v618 = vpack.c.b16 %v588, %v586
        %v619 = vpack.c.b16 %v591, %v589
        %v620 = vpack.c.b16 %v592, %v590
        %v621 = vpack.c.b16 %v595, %v593
        %v622 = vpack.c.b16 %v596, %v594
        %v623 = vpack.c.b16 %v599, %v597
        %v624 = vpack.c.b16 %v600, %v598
        %v625 = vpack.c.b16 %v603, %v601
        %v626 = vpack.c.b16 %v604, %v602
        %v627 = vpack.c.b16 %v607, %v605
        %v628 = vpack.c.b16 %v608, %v606
        %v629 = vpack.c.b16 %v611, %v609
        %v630 = vpack.c.b16 %v612, %v610
        %v631 = vpack.c.b16 %v615, %v613
        %v632 = vpack.c.b16 %v616, %v614
        %649 = vmatprep.subr.bf16.mxu0 %v632
        %650 = vmatpush1.bf16.msra.mxu0 %v631
        %651 = vmatprep.subr.bf16.mxu0 %v630
        %652 = vmatpush1.bf16.msra.mxu0 %v629
        %653 = vmatprep.subr.bf16.mxu0 %v628
        %654 = vmatpush1.bf16.msra.mxu0 %v627
        %655 = vmatprep.subr.bf16.mxu0 %v626
        %656 = vmatpush1.bf16.msra.mxu0 %v625
        %657 = vmatprep.subr.bf16.mxu0 %v624
        %658 = vmatpush1.bf16.msra.mxu0 %v623
        %659 = vmatprep.subr.bf16.mxu0 %v622
        %660 = vmatpush1.bf16.msra.mxu0 %v621
        %661 = vmatprep.subr.bf16.mxu0 %v620
        %662 = vmatpush1.bf16.msra.mxu0 %v619
        %663 = vmatprep.subr.bf16.mxu0 %v618
        %664 = vmatpush1.bf16.msra.mxu0 %v617
        %665 = vmatprep.subr.bf16.mxu0 0
        %666 = vmatpush2.bf16.msra.mxu0 0
        %667 = vmatprep.subr.bf16.mxu0 0
        %668 = vmatpush2.bf16.msra.mxu0 0
        %669 = vmatprep.subr.bf16.mxu0 0
        %670 = vmatpush2.bf16.msra.mxu0 0
        %671 = vmatprep.subr.bf16.mxu0 0
        %672 = vmatpush2.bf16.msra.mxu0 0
        %673 = vmatprep.subr.bf16.mxu0 0
        %674 = vmatpush2.bf16.msra.mxu0 0
        %675 = vmatprep.subr.bf16.mxu0 0
        %676 = vmatpush2.bf16.msra.mxu0 0
        %677 = vmatprep.subr.bf16.mxu0 0
        %678 = vmatpush2.bf16.msra.mxu0 0
        %679 = vmatprep.subr.bf16.mxu0 0
        %680 = vmatpush2.bf16.msra.mxu0 0
        %681 = vmatprep.mubr.bf16.mxu0 0
        %682 = vmatmul.mubr.bf16.gmra.mxu0 %v567
        %v683 = vpop.f32.mrf.mxu0
        %v684 = vadd.f32 %v556, %v683
        %v685 = vpop.f32.mrf.mxu0
        %v686 = vadd.f32 %v560, %v685
        %v687 = vpop.f32.mrf.mxu0
        %v688 = vadd.f32 %v556, %v687
        %v689 = vpop.f32.mrf.mxu0
        %v690 = vadd.f32 %v560, %v689
        %691 = vdwg.mxu0
        %v692 = vpack.c.bf16 %v688, %v684
        %v693 = vpack.c.bf16 %v690, %v686
        %v696 = vunpack.c.l.b16 %v692
        %v697 = vunpack.c.l.b16 %v693
        %v698 = vunpack.c.h.b16 %v692
        %v699 = vunpack.c.h.b16 %v693
        %v700 = vpack.c.b16 %v697, %v696
        %v701 = vpack.c.b16 %v699, %v698
        %704 = vst [vmem:[#allocation3] sm:$0xff] %v700
        %705 = vst [vmem:[#allocation3 + $0x8] sm:$0xff] %v701
        %706 = vst [vmem:[#allocation4] sm:$0xf] 0
        %707 = vst [vmem:[#allocation4 + $0x4] sm:$0xf] 0
        %v708 = vlaneseq
        %v709 = vand.u32 %v708, 127
        %vm710 = vcmp.lt.s32.totalorder %v709, 8
        %v711 = vld [vmem:[#allocation2] sm:$0xf]
        %v712 = vld [vmem:[#allocation2 + $0x4] sm:$0xf]
        %v713 = vld [vmem:[#allocation3] sm:$0xf]
        %v714 = vld [vmem:[#allocation3 + $0x8] sm:$0xf]
        %v715 = vld [vmem:[#allocation3 + $0x4] sm:$0xf]
        %v716 = vld [vmem:[#allocation3 + $0xc] sm:$0xf]
        %v719 = vunpack.c.l.b16 %v711
        %v720 = vunpack.c.l.b16 %v712
        %v721 = vpack.c.b16 %v720, %v719
        %v724 = vunpack.c.l.b16 %v713
        %v725 = vunpack.c.l.b16 %v714
        %v726 = vpack.c.b16 %v725, %v724
        %vm727 = vcmask 130048
        %v729 = vsel %vm727, %v721, 0
        %v732 = vsel %vm727, %v726, 0
        %734 = vmatprep.subr.bf16.mxu0 0
        %735 = vmatpush1.bf16.xpose.msra.mxu0 0
        %736 = vmatprep.subr.bf16.mxu0 0
        %737 = vmatpush1.bf16.xpose.msra.mxu0 0
        %738 = vmatprep.subr.bf16.mxu0 0
        %739 = vmatpush1.bf16.xpose.msra.mxu0 0
        %740 = vmatprep.subr.bf16.mxu0 0
        %741 = vmatpush1.bf16.xpose.msra.mxu0 0
        %742 = vmatprep.subr.bf16.mxu0 0
        %743 = vmatpush1.bf16.xpose.msra.mxu0 0
        %744 = vmatprep.subr.bf16.mxu0 0
        %745 = vmatpush1.bf16.xpose.msra.mxu0 0
        %746 = vmatprep.subr.bf16.mxu0 0
        %747 = vmatpush1.bf16.xpose.msra.mxu0 0
        %748 = vmatprep.subr.bf16.mxu0 0
        %749 = vmatpush1.bf16.xpose.msra.mxu0 %v732
        %750 = vmatprep.subr.bf16.mxu0 0
        %751 = vmatpush2.bf16.xpose.msra.mxu0 0
        %752 = vmatprep.subr.bf16.mxu0 0
        %753 = vmatpush2.bf16.xpose.msra.mxu0 0
        %754 = vmatprep.subr.bf16.mxu0 0
        %755 = vmatpush2.bf16.xpose.msra.mxu0 0
        %756 = vmatprep.subr.bf16.mxu0 0
        %757 = vmatpush2.bf16.xpose.msra.mxu0 0
        %758 = vmatprep.subr.bf16.mxu0 0
        %759 = vmatpush2.bf16.xpose.msra.mxu0 0
        %760 = vmatprep.subr.bf16.mxu0 0
        %761 = vmatpush2.bf16.xpose.msra.mxu0 0
        %762 = vmatprep.subr.bf16.mxu0 0
        %763 = vmatpush2.bf16.xpose.msra.mxu0 0
        %764 = vmatprep.subr.bf16.mxu0 0
        %765 = vmatpush2.bf16.xpose.msra.mxu0 0
        %766 = vmatprep.mubr.bf16.mxu0 0
        %767 = vmatmul.mubr.bf16.gmra.mxu0 %v729
        %v768 = vpop.f32.mrf.mxu0
        %v769 = vadd.f32 0.0, %v768
        %v770 = vpop.f32.mrf.mxu0
        %v771 = vpop.f32.mrf.mxu0
        %v772 = vadd.f32 0.0, %v771
        %v773 = vpop.f32.mrf.mxu0
        %774 = vdwg.mxu0
        %v775 = vmul.f32 %v769, 0.25
        %v776 = vmul.f32 %v772, 0.25
        %v777 = vsel %vm710, %v775, -1e+30
        %v778 = vsel %vm710, %v776, -1e+30
        %v779 = vsel %vm727, %v777, -inf
        %780 = vmax.xlane.f32.xlu0 %v779
        %v781 = vpop.xlane.xlu0 %780
        %v782 = vsel %vm727, %v778, -inf
        %783 = vmax.xlane.f32.xlu0 %v782
        %v784 = vpop.xlane.xlu0 %783
        %v785 = vsub.f32 %v777, %v781
        %v786 = vsub.f32 %v778, %v784
        %v787 = vmul.f32 %v785, 1.442695
        %v788 = vpow.pop %v787
        %v789 = vmul.f32 %v786, 1.442695
        %v790 = vpow.pop %v789
        %v791 = vsel %vm727, %v788, 0.0
        %792 = vadd.xlane.f32.xlu0 %v791
        %v793 = vpop.xlane.xlu0 %792
        %v794 = vsel %vm727, %v790, 0.0
        %795 = vadd.xlane.f32.xlu0 %v794
        %v796 = vpop.xlane.xlu0 %795
        %v797 = vrcp.pop %v793
        %v798 = vrcp.pop %v796
        %v799 = vmul.f32 %v788, %v797
        %v800 = vmul.f32 %v790, %v798
        %v801 = vpack.c.bf16 %v800, %v799
        %v804 = vunpack.c.l.b16 %v715
        %v805 = vunpack.c.l.b16 %v716
        %v806 = vpack.c.b16 %v805, %v804
        %v809 = vsel %vm727, %v801, 0
        %811 = vmatprep.subr.bf16.mxu0 0
        %812 = vmatpush1.bf16.msra.mxu0 0
        %813 = vmatprep.subr.bf16.mxu0 0
        %814 = vmatpush1.bf16.msra.mxu0 0
        %815 = vmatprep.subr.bf16.mxu0 0
        %816 = vmatpush1.bf16.msra.mxu0 0
        %817 = vmatprep.subr.bf16.mxu0 0
        %818 = vmatpush1.bf16.msra.mxu0 0
        %819 = vmatprep.subr.bf16.mxu0 0
        %820 = vmatpush1.bf16.msra.mxu0 0
        %821 = vmatprep.subr.bf16.mxu0 0
        %822 = vmatpush1.bf16.msra.mxu0 0
        %823 = vmatprep.subr.bf16.mxu0 0
        %824 = vmatpush1.bf16.msra.mxu0 0
        %825 = vmatprep.subr.bf16.mxu0 0
        %826 = vmatpush1.bf16.msra.mxu0 %v806
        %827 = vmatprep.subr.bf16.mxu0 0
        %828 = vmatpush2.bf16.msra.mxu0 0
        %829 = vmatprep.subr.bf16.mxu0 0
        %830 = vmatpush2.bf16.msra.mxu0 0
        %831 = vmatprep.subr.bf16.mxu0 0
        %832 = vmatpush2.bf16.msra.mxu0 0
        %833 = vmatprep.subr.bf16.mxu0 0
        %834 = vmatpush2.bf16.msra.mxu0 0
        %835 = vmatprep.subr.bf16.mxu0 0
        %836 = vmatpush2.bf16.msra.mxu0 0
        %837 = vmatprep.subr.bf16.mxu0 0
        %838 = vmatpush2.bf16.msra.mxu0 0
        %839 = vmatprep.subr.bf16.mxu0 0
        %840 = vmatpush2.bf16.msra.mxu0 0
        %841 = vmatprep.subr.bf16.mxu0 0
        %842 = vmatpush2.bf16.msra.mxu0 0
        %843 = vmatprep.mubr.bf16.mxu0 0
        %844 = vmatmul.mubr.bf16.gmra.mxu0 %v809
        %v845 = vpop.f32.mrf.mxu0
        %v846 = vadd.f32 0.0, %v845
        %v847 = vpop.f32.mrf.mxu0
        %v848 = vpop.f32.mrf.mxu0
        %v849 = vadd.f32 0.0, %v848
        %v850 = vpop.f32.mrf.mxu0
        %851 = vdwg.mxu0
        %v852 = vpack.c.bf16 %v849, %v846
        %v854 = vunpack.c.l.b16 %v852
        %v855 = vunpack.c.h.b16 %v852
        %v856 = vpack.c.b16 %v854, %v854
        %v857 = vpack.c.b16 %v855, %v855
        %vm860 = vcmask 125952
        %861 = vst.msk [vmem:[#allocation4] sm:$0xf] %vm860, %v856
        %862 = vst.msk [vmem:[#allocation4 + $0x4] sm:$0xf] %vm860, %v857
        %v863 = vld [vmem:[#allocation2] sm:$0xf]
        %v864 = vld [vmem:[#allocation2 + $0x4] sm:$0xf]
        %v865 = vld [vmem:[#allocation3] sm:$0xf]
        %v866 = vld [vmem:[#allocation3 + $0x8] sm:$0xf]
        %v867 = vld [vmem:[#allocation3 + $0x4] sm:$0xf]
        %v868 = vld [vmem:[#allocation3 + $0xc] sm:$0xf]
        %v871 = vunpack.c.l.b16 %v863
        %v872 = vunpack.c.l.b16 %v864
        %v873 = vpack.c.b16 %v872, %v871
        %874 = vrot.lane.b32.xlu0 %v873, 112
        %v875 = vpop.permute.xlu0 %874
        %v878 = vunpack.c.l.b16 %v865
        %v879 = vunpack.c.l.b16 %v866
        %v880 = vpack.c.b16 %v879, %v878
        %881 = vrot.lane.b32.xlu0 %v880, 112
        %v882 = vpop.permute.xlu0 %881
        %v884 = vsel %vm727, %v875, 0
        %v887 = vsel %vm727, %v882, 0
        %889 = vmatprep.subr.bf16.mxu0 0
        %890 = vmatpush1.bf16.xpose.msra.mxu0 0
        %891 = vmatprep.subr.bf16.mxu0 0
        %892 = vmatpush1.bf16.xpose.msra.mxu0 0
        %893 = vmatprep.subr.bf16.mxu0 0
        %894 = vmatpush1.bf16.xpose.msra.mxu0 0
        %895 = vmatprep.subr.bf16.mxu0 0
        %896 = vmatpush1.bf16.xpose.msra.mxu0 0
        %897 = vmatprep.subr.bf16.mxu0 0
        %898 = vmatpush1.bf16.xpose.msra.mxu0 0
        %899 = vmatprep.subr.bf16.mxu0 0
        %900 = vmatpush1.bf16.xpose.msra.mxu0 0
        %901 = vmatprep.subr.bf16.mxu0 0
        %902 = vmatpush1.bf16.xpose.msra.mxu0 0
        %903 = vmatprep.subr.bf16.mxu0 0
        %904 = vmatpush1.bf16.xpose.msra.mxu0 %v887
        %905 = vmatprep.subr.bf16.mxu0 0
        %906 = vmatpush2.bf16.xpose.msra.mxu0 0
        %907 = vmatprep.subr.bf16.mxu0 0
        %908 = vmatpush2.bf16.xpose.msra.mxu0 0
        %909 = vmatprep.subr.bf16.mxu0 0
        %910 = vmatpush2.bf16.xpose.msra.mxu0 0
        %911 = vmatprep.subr.bf16.mxu0 0
        %912 = vmatpush2.bf16.xpose.msra.mxu0 0
        %913 = vmatprep.subr.bf16.mxu0 0
        %914 = vmatpush2.bf16.xpose.msra.mxu0 0
        %915 = vmatprep.subr.bf16.mxu0 0
        %916 = vmatpush2.bf16.xpose.msra.mxu0 0
        %917 = vmatprep.subr.bf16.mxu0 0
        %918 = vmatpush2.bf16.xpose.msra.mxu0 0
        %919 = vmatprep.subr.bf16.mxu0 0
        %920 = vmatpush2.bf16.xpose.msra.mxu0 0
        %921 = vmatprep.mubr.bf16.mxu0 0
        %922 = vmatmul.mubr.bf16.gmra.mxu0 %v884
        %v923 = vpop.f32.mrf.mxu0
        %v924 = vadd.f32 0.0, %v923
        %v925 = vpop.f32.mrf.mxu0
        %v926 = vpop.f32.mrf.mxu0
        %v927 = vadd.f32 0.0, %v926
        %v928 = vpop.f32.mrf.mxu0
        %929 = vdwg.mxu0
        %v930 = vmul.f32 %v924, 0.25
        %v931 = vmul.f32 %v927, 0.25
        %v932 = vsel %vm710, %v930, -1e+30
        %v933 = vsel %vm710, %v931, -1e+30
        %v934 = vsel %vm727, %v932, -inf
        %935 = vmax.xlane.f32.xlu0 %v934
        %v936 = vpop.xlane.xlu0 %935
        %v937 = vsel %vm727, %v933, -inf
        %938 = vmax.xlane.f32.xlu0 %v937
        %v939 = vpop.xlane.xlu0 %938
        %v940 = vsub.f32 %v932, %v936
        %v941 = vsub.f32 %v933, %v939
        %v942 = vmul.f32 %v940, 1.442695
        %v943 = vpow.pop %v942
        %v944 = vmul.f32 %v941, 1.442695
        %v945 = vpow.pop %v944
        %v946 = vsel %vm727, %v943, 0.0
        %947 = vadd.xlane.f32.xlu0 %v946
        %v948 = vpop.xlane.xlu0 %947
        %v949 = vsel %vm727, %v945, 0.0
        %950 = vadd.xlane.f32.xlu0 %v949
        %v951 = vpop.xlane.xlu0 %950
        %v952 = vrcp.pop %v948
        %v953 = vrcp.pop %v951
        %v954 = vmul.f32 %v943, %v952
        %v955 = vmul.f32 %v945, %v953
        %v956 = vpack.c.bf16 %v955, %v954
        %v959 = vunpack.c.l.b16 %v867
        %v960 = vunpack.c.l.b16 %v868
        %v961 = vpack.c.b16 %v960, %v959
        %962 = vrot.lane.b32.xlu0 %v961, 112
        %v963 = vpop.permute.xlu0 %962
        %v966 = vsel %vm727, %v956, 0
        %968 = vmatprep.subr.bf16.mxu0 0
        %969 = vmatpush1.bf16.msra.mxu0 0
        %970 = vmatprep.subr.bf16.mxu0 0
        %971 = vmatpush1.bf16.msra.mxu0 0
        %972 = vmatprep.subr.bf16.mxu0 0
        %973 = vmatpush1.bf16.msra.mxu0 0
        %974 = vmatprep.subr.bf16.mxu0 0
        %975 = vmatpush1.bf16.msra.mxu0 0
        %976 = vmatprep.subr.bf16.mxu0 0
        %977 = vmatpush1.bf16.msra.mxu0 0
        %978 = vmatprep.subr.bf16.mxu0 0
        %979 = vmatpush1.bf16.msra.mxu0 0
        %980 = vmatprep.subr.bf16.mxu0 0
        %981 = vmatpush1.bf16.msra.mxu0 0
        %982 = vmatprep.subr.bf16.mxu0 0
        %983 = vmatpush1.bf16.msra.mxu0 %v963
        %984 = vmatprep.subr.bf16.mxu0 0
        %985 = vmatpush2.bf16.msra.mxu0 0
        %986 = vmatprep.subr.bf16.mxu0 0
        %987 = vmatpush2.bf16.msra.mxu0 0
        %988 = vmatprep.subr.bf16.mxu0 0
        %989 = vmatpush2.bf16.msra.mxu0 0
        %990 = vmatprep.subr.bf16.mxu0 0
        %991 = vmatpush2.bf16.msra.mxu0 0
        %992 = vmatprep.subr.bf16.mxu0 0
        %993 = vmatpush2.bf16.msra.mxu0 0
        %994 = vmatprep.subr.bf16.mxu0 0
        %995 = vmatpush2.bf16.msra.mxu0 0
        %996 = vmatprep.subr.bf16.mxu0 0
        %997 = vmatpush2.bf16.msra.mxu0 0
        %998 = vmatprep.subr.bf16.mxu0 0
        %999 = vmatpush2.bf16.msra.mxu0 0
        %1000 = vmatprep.mubr.bf16.mxu0 0
        %1001 = vmatmul.mubr.bf16.gmra.mxu0 %v966
        %v1002 = vpop.f32.mrf.mxu0
        %v1003 = vadd.f32 0.0, %v1002
        %v1004 = vpop.f32.mrf.mxu0
        %v1005 = vpop.f32.mrf.mxu0
        %v1006 = vadd.f32 0.0, %v1005
        %v1007 = vpop.f32.mrf.mxu0
        %1008 = vdwg.mxu0
        %v1009 = vpack.c.bf16 %v1006, %v1003
        %v1011 = vunpack.c.l.b16 %v1009
        %v1012 = vunpack.c.h.b16 %v1009
        %v1013 = vpack.c.b16 %v1011, %v1011
        %v1014 = vpack.c.b16 %v1012, %v1012
        %1015 = vrot.lane.b32.xlu0 %v1013, 16
        %v1016 = vpop.permute.xlu0 %1015
        %1017 = vrot.lane.b32.xlu0 %v1014, 16
        %v1018 = vpop.permute.xlu0 %1017
        %vm1021 = vcmask 257152
        %1022 = vst.msk [vmem:[#allocation4] sm:$0xf] %vm1021, %v1016
        %1023 = vst.msk [vmem:[#allocation4 + $0x4] sm:$0xf] %vm1021, %v1018
        %v1024 = vld [vmem:[#allocation4] sm:$0xf]
        %v1025 = vld [vmem:[#allocation4 + $0x4] sm:$0xf]
        %v1026 = vld [vmem:[#allocation13] sm:$0xf]
        %v1027 = vld [vmem:[#allocation13 + $0x4] sm:$0xf]
        %v1028 = vld [vmem:[#allocation13 + $0x8] sm:$0xf]
        %v1029 = vld [vmem:[#allocation13 + $0xc] sm:$0xf]
        %v1030 = vld [vmem:[#allocation13 + $0x10] sm:$0xf]
        %v1031 = vld [vmem:[#allocation13 + $0x14] sm:$0xf]
        %v1032 = vld [vmem:[#allocation13 + $0x18] sm:$0xf]
        %v1033 = vld [vmem:[#allocation13 + $0x1c] sm:$0xf]
        %v1034 = vld [vmem:[#allocation13 + $0x20] sm:$0xf]
        %v1035 = vld [vmem:[#allocation13 + $0x24] sm:$0xf]
        %v1036 = vld [vmem:[#allocation13 + $0x28] sm:$0xf]
        %v1037 = vld [vmem:[#allocation13 + $0x2c] sm:$0xf]
        %v1038 = vld [vmem:[#allocation13 + $0x30] sm:$0xf]
        %v1039 = vld [vmem:[#allocation13 + $0x34] sm:$0xf]
        %v1040 = vld [vmem:[#allocation13 + $0x38] sm:$0xf]
        %v1041 = vld [vmem:[#allocation13 + $0x3c] sm:$0xf]
        %v1042 = vld [vmem:[%s7] sm:$0x1]
        %v1044 = vlaneseq
        %v1045 = vshrl.u32 %v1044, 7
        %v1046 = vsub.s32 0, %v1045
        %v1047 = vrot.slane %v1042, %v1046
        %v1051 = vunpack.c.l.b16 %v1024
        %v1052 = vunpack.c.l.b16 %v1025
        %v1053 = vpack.c.b16 %v1052, %v1051
        %v1071 = vunpack.c.l.b16 %v1026
        %v1072 = vunpack.c.l.b16 %v1027
        %v1073 = vunpack.c.l.b16 %v1028
        %v1074 = vunpack.c.l.b16 %v1029
        %v1075 = vunpack.c.l.b16 %v1030
        %v1076 = vunpack.c.l.b16 %v1031
        %v1077 = vunpack.c.l.b16 %v1032
        %v1078 = vunpack.c.l.b16 %v1033
        %v1079 = vunpack.c.l.b16 %v1034
        %v1080 = vunpack.c.l.b16 %v1035
        %v1081 = vunpack.c.l.b16 %v1036
        %v1082 = vunpack.c.l.b16 %v1037
        %v1083 = vunpack.c.l.b16 %v1038
        %v1084 = vunpack.c.l.b16 %v1039
        %v1085 = vunpack.c.l.b16 %v1040
        %v1086 = vunpack.c.l.b16 %v1041
        %v1087 = vpack.c.b16 %v1072, %v1071
        %v1088 = vpack.c.b16 %v1074, %v1073
        %v1089 = vpack.c.b16 %v1076, %v1075
        %v1090 = vpack.c.b16 %v1078, %v1077
        %v1091 = vpack.c.b16 %v1080, %v1079
        %v1092 = vpack.c.b16 %v1082, %v1081
        %v1093 = vpack.c.b16 %v1084, %v1083
        %v1094 = vpack.c.b16 %v1086, %v1085
        %1103 = vmatprep.subr.bf16.mxu0 0
        %1104 = vmatpush1.bf16.msra.mxu0 %v1094
        %1105 = vmatprep.subr.bf16.mxu0 0
        %1106 = vmatpush1.bf16.msra.mxu0 %v1093
        %1107 = vmatprep.subr.bf16.mxu0 0
        %1108 = vmatpush1.bf16.msra.mxu0 %v1092
        %1109 = vmatprep.subr.bf16.mxu0 0
        %1110 = vmatpush1.bf16.msra.mxu0 %v1091
        %1111 = vmatprep.subr.bf16.mxu0 0
        %1112 = vmatpush1.bf16.msra.mxu0 %v1090
        %1113 = vmatprep.subr.bf16.mxu0 0
        %1114 = vmatpush1.bf16.msra.mxu0 %v1089
        %1115 = vmatprep.subr.bf16.mxu0 0
        %1116 = vmatpush1.bf16.msra.mxu0 %v1088
        %1117 = vmatprep.subr.bf16.mxu0 0
        %1118 = vmatpush1.bf16.msra.mxu0 %v1087
        %1119 = vmatprep.subr.bf16.mxu0 0
        %1120 = vmatpush2.bf16.msra.mxu0 0
        %1121 = vmatprep.subr.bf16.mxu0 0
        %1122 = vmatpush2.bf16.msra.mxu0 0
        %1123 = vmatprep.subr.bf16.mxu0 0
        %1124 = vmatpush2.bf16.msra.mxu0 0
        %1125 = vmatprep.subr.bf16.mxu0 0
        %1126 = vmatpush2.bf16.msra.mxu0 0
        %1127 = vmatprep.subr.bf16.mxu0 0
        %1128 = vmatpush2.bf16.msra.mxu0 0
        %1129 = vmatprep.subr.bf16.mxu0 0
        %1130 = vmatpush2.bf16.msra.mxu0 0
        %1131 = vmatprep.subr.bf16.mxu0 0
        %1132 = vmatpush2.bf16.msra.mxu0 0
        %1133 = vmatprep.subr.bf16.mxu0 0
        %1134 = vmatpush2.bf16.msra.mxu0 0
        %1135 = vmatprep.mubr.bf16.mxu0 0
        %1136 = vmatmul.mubr.bf16.gmra.mxu0 %v1053
        %v1137 = vpop.f32.mrf.mxu0
        %v1138 = vadd.f32 %v1047, %v1137
        %v1139 = vpop.f32.mrf.mxu0
        %v1140 = vpop.f32.mrf.mxu0
        %v1141 = vadd.f32 %v1047, %v1140
        %v1142 = vpop.f32.mrf.mxu0
        %1143 = vdwg.mxu0
        %v1144 = vld [vmem:[%s348] sm:$0xff]
        %v1145 = vld [vmem:[%s348 + $0x8] sm:$0xff]
        %v1146 = vadd.f32 %v1138, %v1144
        %v1147 = vadd.f32 %v1141, %v1145
        %1148 = vst [vmem:[%s406] sm:$0xff] %v1146
        %1149 = vst [vmem:[%s406 + $0x8] sm:$0xff] %v1147
        %s1150 = sand.u32 %s215, 1
        %s1151 = scalar_lea.sflag [#allocation7], %s1150
        %s1152 = sand.u32 %s215, 1
        %s1153 = smul.addr %s1152, 16
        %s1154 = scalar_lea.vmem [#allocation14], %s1153
        // Predicated region
        $region73: #{tpu_custom_call.1} parent=51 // pred_check
          %p1155 = pneg %p225
        $region74: #{tpu_custom_call.1} parent=51 // pred_check_branch
          %1157 = sbr.rel (%p1155) target = $region76
        $region75: #{tpu_custom_call.1} parent=51 // pred_region
          %s1159 = ssub.s32 256, 256
          %1160 = vsyncadd %s1151, %s1159
          %s1161 = smul.addr %s29, 2
          %s1162 = smul.addr %s1161, 128
          %s1163 = scalar_lea.hbm %s8, %s1162
          %s1164 = sshll.u32 %s1154, 4
          %s1165 = int_to_ptr.vmem [resolvable:$true] %s1164
          %1170 = dma.vmem_to_hbm [thread:$0]  %s1165, 256, %s1163, %s1151, 128, 128, 8
        $region76: #{tpu_custom_call.1} parent=51 // pred_fallthru
          _
      $region52: #{tpu_custom_call.1} parent=5 // pred_fallthru
        _
      %p1171 = scmp.le.s32.totalorder 2, %s24
      // Predicated region
      $region77: #{tpu_custom_call.1} parent=5 // pred_check
        %p1172 = pneg %p1171
      $region78: #{tpu_custom_call.1} parent=5 // pred_check_branch
        %1174 = sbr.rel (%p1172) target = $region80
      $region79: #{tpu_custom_call.1} parent=5 // pred_region
        %s1175 = ssub.s32 %s24, 2
        // Predicated region
        $region81: #{tpu_custom_call.1} parent=79 // pred_check
          %p1176 = pneg %p231
        $region82: #{tpu_custom_call.1} parent=79 // pred_check_branch
          %1178 = sbr.rel (%p1176) target = $region84
        $region83: #{tpu_custom_call.1} parent=79 // pred_region
          %s1179 = sand.u32 %s216, 1
          %s1180 = scalar_lea.sflag [#allocation7], %s1179
          %s1181 = sand.u32 %s216, 1
          %s1182 = smul.addr %s1181, 16
          %s1183 = scalar_lea.vmem [#allocation14], %s1182
          %1184 = dma.done %s1180, 256
        $region84: #{tpu_custom_call.1} parent=79 // pred_fallthru
          _
      $region80: #{tpu_custom_call.1} parent=5 // pred_fallthru
        _
    $region6: #{tpu_custom_call.1} parent=1 // loop_footer
      %s28 = sadd.s32 1, %s24
    $region7: #{tpu_custom_call.1} parent=1 // loop_footer_branch
      %23 = sbr.rel target = $region3
    $region8: #{tpu_custom_call.1} parent=1 // loop_exit
      _
    %1185 = vsyncpa [#allocation6], 1
    %s1186 = scalar_lea.sflag [#allocation6], 1
    %1187 = vsyncpa %s1186, 1
    %1188 = vsyncpa [#allocation9], 1
    %s1189 = scalar_lea.sflag [#allocation9], 1
    %1190 = vsyncpa %s1189, 1
    %1191 = vsyncpa [#allocation12], 1
    %1192 = vsyncpa [#allocation7], 1
    %s1193 = scalar_lea.sflag [#allocation7], 1
    %1194 = vsyncpa %s1193, 1

</llo_original>
